<compile_context>
chip_gen: v7x
topology: tpu7x:2x2x1
jax: 0.10.0
libtpu: 0.0.40
codegen_flags: <defaults>
</compile_context>

<pallas_src>
import jax
import jax.numpy as jnp
from jax import lax
from jax.experimental import pallas as pl
from jax.experimental.pallas import tpu as pltpu


def _round_up(x, m):
    return ((x + m - 1) // m) * m


def _encode_kernel(tok_ref, mask_ref, coord_ref, wte_ref,
                   wc_ref, bc_ref, w1_ref, b1_ref, w2_ref, b2_ref,
                   wo_cls_ref, wo_crd_ref, bo_ref, out_ref):
    tok = tok_ref[...]                          # [TM, T] int32
    mask = mask_ref[...]                        # [TM, T] f32
    tm, t_len = tok.shape
    vp = wte_ref.shape[0]

    # --- fused embedding gather + masked sum: histogram (VPU) then MXU ---
    # hist[m, v] = sum_t mask[m, t] * (tok[m, t] == v)
    iota_v = lax.broadcasted_iota(jnp.int32, (tm, vp), 1)
    hist = jnp.where(tok[:, 0:1] == iota_v, mask[:, 0:1], 0.0)
    for t in range(1, t_len):                   # T is small & static -> unrolled
        hist = hist + jnp.where(tok[:, t:t + 1] == iota_v, mask[:, t:t + 1], 0.0)

    num = jnp.dot(hist, wte_ref[...], preferred_element_type=jnp.float32)  # [TM, H]
    den = 1e-9 + jnp.sum(mask, axis=1, keepdims=True)                      # [TM, 1]
    feat = num / den                                                        # [TM, H]

    # --- class_fc ---
    class_emb = jnp.dot(feat, wc_ref[...],
                        preferred_element_type=jnp.float32) + bc_ref[...]

    # --- coord MLP: K=3 layer as 3 VPU broadcast FMAs, 2nd layer on MXU ---
    coord = coord_ref[...]                      # [TM, 3]
    w1 = w1_ref[...]                            # [3, HALF]
    h = (coord[:, 0:1] * w1[0:1, :]
         + coord[:, 1:2] * w1[1:2, :]
         + coord[:, 2:3] * w1[2:3, :]
         + b1_ref[...])
    h = jnp.maximum(h, 0.0)
    coord_emb = jnp.dot(h, w2_ref[...],
                        preferred_element_type=jnp.float32) + b2_ref[...]

    # --- combine: ReLU(cat([cls, crd])) @ W == ReLU(cls)@W_top + ReLU(crd)@W_bot ---
    out = (jnp.dot(jnp.maximum(class_emb, 0.0), wo_cls_ref[...],
                   preferred_element_type=jnp.float32)
           + jnp.dot(jnp.maximum(coord_emb, 0.0), wo_crd_ref[...],
                     preferred_element_type=jnp.float32)
           + bo_ref[...])
    out_ref[...] = out.astype(out_ref.dtype)


def obj_name_coord_encode(tokens, token_mask, coords, params, *, tm=None):
    """Forward pass matching the PyTorch module.

    tokens:     [B, N, T] int token ids
    token_mask: [B, N, T] mask
    coords:     [B, N, 3]
    returns:    [B, N, H_LLM] float32
    """
    B, N, T = tokens.shape
    M = B * N

    wte = params["wte"].astype(jnp.float32)
    V, h_llm = wte.shape
    half = params["w_class"].shape[1]
    hidden = 2 * half

    # Vocab padded to a lane-aligned width; histogram entries for padded ids
    # are always zero, so the zero-padded wte rows never contribute.
    Vp = _round_up(max(V, 128), 128)
    wte_p = jnp.zeros((Vp, h_llm), jnp.float32).at[:V, :].set(wte)

    tok = tokens.reshape(M, T).astype(jnp.int32)
    mask = token_mask.reshape(M, T).astype(jnp.float32)
    crd = coords.reshape(M, 3).astype(jnp.float32)

    # ---- row-tile selection: biggest tile under a conservative VMEM budget ----
    if tm is None:
        per_row = (2 * (4 * T + 4 * T + 4 * 3 + 4 * h_llm)   # dbl-buffered streams + out
                   + 4 * (Vp + 4 * h_llm))                    # in-kernel intermediates
        budget = 12 * 1024 * 1024                             # safe on v7x's 64 MiB VMEM
        tm = max(8, min(512, budget // max(per_row, 1)))
        tm = (tm // 8) * 8
    tm = min(tm, _round_up(M, 8))
    Mp = _round_up(M, tm)
    if Mp != M:                                  # handle ragged M via padding
        pad = Mp - M
        tok = jnp.pad(tok, ((0, pad), (0, 0)))
        mask = jnp.pad(mask, ((0, pad), (0, 0)))
        crd = jnp.pad(crd, ((0, pad), (0, 0)))

    grid = (Mp // tm,)

    # combine weight rows split into class / coord halves (avoids in-kernel concat)
    wo = params["w_comb"].astype(jnp.float32)
    wo_cls, wo_crd = wo[:half], wo[half:]
    w_class = params["w_class"].astype(jnp.float32)
    w_c1 = params["w_c1"].astype(jnp.float32)
    w_c2 = params["w_c2"].astype(jnp.float32)
    b_class = params["b_class"].reshape(1, half).astype(jnp.float32)
    b_c1 = params["b_c1"].reshape(1, half).astype(jnp.float32)
    b_c2 = params["b_c2"].reshape(1, half).astype(jnp.float32)
    b_comb = params["b_comb"].reshape(1, h_llm).astype(jnp.float32)

    weight_bytes = 4 * (Vp * h_llm + h_llm * half + 3 * half + half * half
                        + 2 * half * h_llm + 3 * half + h_llm)
    block_bytes = (2 * tm * 4 * (2 * T + 3 + h_llm)      # dbl-buffered streams + out
                   + 2 * weight_bytes                     # worst case: dbl-buffered weights
                   + 4 * tm * (Vp + 4 * h_llm))           # hist / feat intermediates
    vmem_limit = int(min(max(2 * block_bytes, 16 * 1024 * 1024), 48 * 1024 * 1024))

    flops = 2 * Mp * (T * Vp + Vp * h_llm + h_llm * half
                      + 3 * half + half * half + hidden * h_llm)
    bytes_accessed = 4 * Mp * (2 * T + 3 + h_llm) + weight_bytes
    cost = pl.CostEstimate(flops=int(flops), transcendentals=0,
                           bytes_accessed=int(bytes_accessed))

    def _row_spec(shape):
        return pl.BlockSpec(shape, lambda i: (i, 0))

    def _run(single_buffer_weights):
        if single_buffer_weights:
            def _w_spec(shape):
                # constant-index blocks: no double buffering -> frees VMEM
                return pl.BlockSpec(shape, lambda i: (0, 0),
                                    pipeline_mode=pl.Buffered(1))
        else:
            def _w_spec(shape):
                return pl.BlockSpec(shape, lambda i: (0, 0))

        return pl.pallas_call(
            _encode_kernel,
            out_shape=jax.ShapeDtypeStruct((Mp, h_llm), jnp.float32),
            grid_spec=pltpu.PrefetchScalarGridSpec(
                num_scalar_prefetch=0,
                grid=grid,
                in_specs=[
                    _row_spec((tm, T)),          # token ids
                    _row_spec((tm, T)),          # token mask
                    _row_spec((tm, 3)),          # coords
                    _w_spec((Vp, h_llm)),        # wte (padded vocab)
                    _w_spec((h_llm, half)),      # W_class
                    _w_spec((1, half)),          # b_class
                    _w_spec((3, half)),          # W_c1
                    _w_spec((1, half)),          # b_c1
                    _w_spec((half, half)),       # W_c2
                    _w_spec((1, half)),          # b_c2
                    _w_spec((half, h_llm)),      # W_comb rows hitting class_emb
                    _w_spec((half, h_llm)),      # W_comb rows hitting coord_emb
                    _w_spec((1, h_llm)),         # b_comb
                ],
                out_specs=pl.BlockSpec((tm, h_llm), lambda i: (i, 0)),
            ),
            compiler_params=pltpu.CompilerParams(
                dimension_semantics=("parallel",),
                vmem_limit_bytes=vmem_limit),
            cost_estimate=cost,
        )(tok, mask, crd, wte_p,
          w_class, b_class, w_c1, b_c1, w_c2, b_c2,
          wo_cls, wo_crd, b_comb)

    try:
        out = _run(True)         # single-buffered constant weights
    except Exception:            # BlockSpec(pipeline_mode=...)/Buffered(1) unsupported
        out = _run(False)

    return out[:M].reshape(B, N, h_llm)


def _reference(tokens, token_mask, coords, params):
    """Pure-JAX reference mirroring the PyTorch forward exactly."""
    wte = params["wte"]
    emb = jnp.take(wte, tokens, axis=0)                                # [B,N,T,H]
    feat = (emb * token_mask[:, :, :, None]).sum(2) / (
        1e-9 + token_mask.sum(2)[:, :, None])
    class_emb = feat @ params["w_class"] + params["b_class"]
    h = jnp.maximum(coords @ params["w_c1"] + params["b_c1"], 0.0)
    coord_emb = h @ params["w_c2"] + params["b_c2"]
    inp = jnp.concatenate([class_emb, coord_emb], axis=2)
    return jnp.maximum(inp, 0.0) @ params["w_comb"] + params["b_comb"]


if __name__ == "__main__":
    # small, module-consistent shapes
    B, N, T = 2, 8, 8          # batch, num objects, tokens per object name
    VOCAB = 50
    H_LLM = 32                 # args.llm_hidden_size (output_dim)
    HIDDEN = 32                # args.hidden_size
    HALF = HIDDEN // 2

    key = jax.random.PRNGKey(0)
    ks = jax.random.split(key, 12)

    params = {
        "wte":     jax.random.normal(ks[0], (VOCAB, H_LLM), jnp.float32) * 0.1,
        "w_class": jax.random.normal(ks[1], (H_LLM, HALF), jnp.float32) * 0.1,
        "b_class": jax.random.normal(ks[2], (HALF,), jnp.float32) * 0.1,
        "w_c1":    jax.random.normal(ks[3], (3, HALF), jnp.float32) * 0.1,
        "b_c1":    jax.random.normal(ks[4], (HALF,), jnp.float32) * 0.1,
        "w_c2":    jax.random.normal(ks[5], (HALF, HALF), jnp.float32) * 0.1,
        "b_c2":    jax.random.normal(ks[6], (HALF,), jnp.float32) * 0.1,
        "w_comb":  jax.random.normal(ks[7], (HIDDEN, H_LLM), jnp.float32) * 0.1,
        "b_comb":  jax.random.normal(ks[8], (H_LLM,), jnp.float32) * 0.1,
    }

    tokens = jax.random.randint(ks[9], (B, N, T), 0, VOCAB, dtype=jnp.int32)
    token_mask = jax.random.bernoulli(ks[10], 0.7, (B, N, T)).astype(jnp.float32)
    coords = jax.random.normal(ks[11], (B, N, 3), jnp.float32)

    out = obj_name_coord_encode(tokens, token_mask, coords, params)
    out = jax.block_until_ready(out)

    ref = _reference(tokens, token_mask, coords, params)
    assert out.shape == (B, N, H_LLM)
    assert jnp.allclose(out, ref, atol=1e-4, rtol=1e-4), "mismatch vs reference"

    print("KERNEL_OK")
</pallas_src>

<mosaic_0001>
module attributes {stable_mosaic.version = 11 : i64} {
  func.func @_encode_kernel(%arg0: i32, %arg1: memref<16x8xi32, #tpu.memory_space<vmem>>, %arg2: memref<16x8xf32, #tpu.memory_space<vmem>>, %arg3: memref<16x3xf32, #tpu.memory_space<vmem>>, %arg4: memref<128x32xf32, #tpu.memory_space<vmem>>, %arg5: memref<32x16xf32, #tpu.memory_space<vmem>>, %arg6: memref<1x16xf32, #tpu.memory_space<vmem>>, %arg7: memref<3x16xf32, #tpu.memory_space<vmem>>, %arg8: memref<1x16xf32, #tpu.memory_space<vmem>>, %arg9: memref<16x16xf32, #tpu.memory_space<vmem>>, %arg10: memref<1x16xf32, #tpu.memory_space<vmem>>, %arg11: memref<16x32xf32, #tpu.memory_space<vmem>>, %arg12: memref<16x32xf32, #tpu.memory_space<vmem>>, %arg13: memref<1x32xf32, #tpu.memory_space<vmem>>, %arg14: memref<16x32xf32, #tpu.memory_space<vmem>>) attributes {dimension_semantics = [#tpu.dimension_semantics<parallel>], iteration_bounds = array<i64: 1>, scalar_prefetch = 0 : i64, scratch_operands = 0 : i64, tpu.core_type = #tpu.core_type<tc>, window_params = [{transform_indices = @transform_0, window_bounds = array<i64: 16, 8>}, {transform_indices = @transform_1, window_bounds = array<i64: 16, 8>}, {transform_indices = @transform_2, window_bounds = array<i64: 16, 3>}, {pipeline_mode = #tpu.pipeline_mode<synchronous>, transform_indices = @transform_3, window_bounds = array<i64: 128, 32>}, {pipeline_mode = #tpu.pipeline_mode<synchronous>, transform_indices = @transform_4, window_bounds = array<i64: 32, 16>}, {pipeline_mode = #tpu.pipeline_mode<synchronous>, transform_indices = @transform_5, window_bounds = array<i64: 1, 16>}, {pipeline_mode = #tpu.pipeline_mode<synchronous>, transform_indices = @transform_6, window_bounds = array<i64: 3, 16>}, {pipeline_mode = #tpu.pipeline_mode<synchronous>, transform_indices = @transform_7, window_bounds = array<i64: 1, 16>}, {pipeline_mode = #tpu.pipeline_mode<synchronous>, transform_indices = @transform_8, window_bounds = array<i64: 16, 16>}, {pipeline_mode = #tpu.pipeline_mode<synchronous>, transform_indices = @transform_9, window_bounds = array<i64: 1, 16>}, {pipeline_mode = #tpu.pipeline_mode<synchronous>, transform_indices = @transform_10, window_bounds = array<i64: 16, 32>}, {pipeline_mode = #tpu.pipeline_mode<synchronous>, transform_indices = @transform_11, window_bounds = array<i64: 16, 32>}, {pipeline_mode = #tpu.pipeline_mode<synchronous>, transform_indices = @transform_12, window_bounds = array<i64: 1, 32>}, {transform_indices = @transform_13, window_bounds = array<i64: 16, 32>}]} {
    %c0 = arith.constant 0 : index
    %c0_0 = arith.constant 0 : index
    %0 = vector.load %arg1[%c0, %c0_0] : memref<16x8xi32, #tpu.memory_space<vmem>>, vector<16x8xi32>
    %c0_1 = arith.constant 0 : index
    %c0_2 = arith.constant 0 : index
    %1 = vector.load %arg2[%c0_1, %c0_2] : memref<16x8xf32, #tpu.memory_space<vmem>>, vector<16x8xf32>
    %2 = tpu.iota {dimensions = array<i32: 1>} : vector<16x128xi32>
    %3 = vector.extract_strided_slice %0 {offsets = [0, 0], sizes = [16, 1], strides = [1, 1]} : vector<16x8xi32> to vector<16x1xi32>
    %4 = vector.broadcast %3 : vector<16x1xi32> to vector<16x128xi32>
    %5 = arith.cmpi eq, %4, %2 : vector<16x128xi32>
    %6 = vector.extract_strided_slice %1 {offsets = [0, 0], sizes = [16, 1], strides = [1, 1]} : vector<16x8xf32> to vector<16x1xf32>
    %cst = arith.constant 0.000000e+00 : f32
    %7 = vector.shape_cast %6 : vector<16x1xf32> to vector<16x1xf32>
    %8 = vector.broadcast %7 : vector<16x1xf32> to vector<16x128xf32>
    %9 = vector.broadcast %cst : f32 to vector<16x128xf32>
    %10 = arith.select %5, %8, %9 : vector<16x128xi1>, vector<16x128xf32>
    %11 = vector.extract_strided_slice %0 {offsets = [0, 1], sizes = [16, 1], strides = [1, 1]} : vector<16x8xi32> to vector<16x1xi32>
    %12 = vector.broadcast %11 : vector<16x1xi32> to vector<16x128xi32>
    %13 = arith.cmpi eq, %12, %2 : vector<16x128xi32>
    %14 = vector.extract_strided_slice %1 {offsets = [0, 1], sizes = [16, 1], strides = [1, 1]} : vector<16x8xf32> to vector<16x1xf32>
    %cst_3 = arith.constant 0.000000e+00 : f32
    %15 = vector.shape_cast %14 : vector<16x1xf32> to vector<16x1xf32>
    %16 = vector.broadcast %15 : vector<16x1xf32> to vector<16x128xf32>
    %17 = vector.broadcast %cst_3 : f32 to vector<16x128xf32>
    %18 = arith.select %13, %16, %17 : vector<16x128xi1>, vector<16x128xf32>
    %19 = arith.addf %10, %18 : vector<16x128xf32>
    %20 = vector.extract_strided_slice %0 {offsets = [0, 2], sizes = [16, 1], strides = [1, 1]} : vector<16x8xi32> to vector<16x1xi32>
    %21 = vector.broadcast %20 : vector<16x1xi32> to vector<16x128xi32>
    %22 = arith.cmpi eq, %21, %2 : vector<16x128xi32>
    %23 = vector.extract_strided_slice %1 {offsets = [0, 2], sizes = [16, 1], strides = [1, 1]} : vector<16x8xf32> to vector<16x1xf32>
    %cst_4 = arith.constant 0.000000e+00 : f32
    %24 = vector.shape_cast %23 : vector<16x1xf32> to vector<16x1xf32>
    %25 = vector.broadcast %24 : vector<16x1xf32> to vector<16x128xf32>
    %26 = vector.broadcast %cst_4 : f32 to vector<16x128xf32>
    %27 = arith.select %22, %25, %26 : vector<16x128xi1>, vector<16x128xf32>
    %28 = arith.addf %19, %27 : vector<16x128xf32>
    %29 = vector.extract_strided_slice %0 {offsets = [0, 3], sizes = [16, 1], strides = [1, 1]} : vector<16x8xi32> to vector<16x1xi32>
    %30 = vector.broadcast %29 : vector<16x1xi32> to vector<16x128xi32>
    %31 = arith.cmpi eq, %30, %2 : vector<16x128xi32>
    %32 = vector.extract_strided_slice %1 {offsets = [0, 3], sizes = [16, 1], strides = [1, 1]} : vector<16x8xf32> to vector<16x1xf32>
    %cst_5 = arith.constant 0.000000e+00 : f32
    %33 = vector.shape_cast %32 : vector<16x1xf32> to vector<16x1xf32>
    %34 = vector.broadcast %33 : vector<16x1xf32> to vector<16x128xf32>
    %35 = vector.broadcast %cst_5 : f32 to vector<16x128xf32>
    %36 = arith.select %31, %34, %35 : vector<16x128xi1>, vector<16x128xf32>
    %37 = arith.addf %28, %36 : vector<16x128xf32>
    %38 = vector.extract_strided_slice %0 {offsets = [0, 4], sizes = [16, 1], strides = [1, 1]} : vector<16x8xi32> to vector<16x1xi32>
    %39 = vector.broadcast %38 : vector<16x1xi32> to vector<16x128xi32>
    %40 = arith.cmpi eq, %39, %2 : vector<16x128xi32>
    %41 = vector.extract_strided_slice %1 {offsets = [0, 4], sizes = [16, 1], strides = [1, 1]} : vector<16x8xf32> to vector<16x1xf32>
    %cst_6 = arith.constant 0.000000e+00 : f32
    %42 = vector.shape_cast %41 : vector<16x1xf32> to vector<16x1xf32>
    %43 = vector.broadcast %42 : vector<16x1xf32> to vector<16x128xf32>
    %44 = vector.broadcast %cst_6 : f32 to vector<16x128xf32>
    %45 = arith.select %40, %43, %44 : vector<16x128xi1>, vector<16x128xf32>
    %46 = arith.addf %37, %45 : vector<16x128xf32>
    %47 = vector.extract_strided_slice %0 {offsets = [0, 5], sizes = [16, 1], strides = [1, 1]} : vector<16x8xi32> to vector<16x1xi32>
    %48 = vector.broadcast %47 : vector<16x1xi32> to vector<16x128xi32>
    %49 = arith.cmpi eq, %48, %2 : vector<16x128xi32>
    %50 = vector.extract_strided_slice %1 {offsets = [0, 5], sizes = [16, 1], strides = [1, 1]} : vector<16x8xf32> to vector<16x1xf32>
    %cst_7 = arith.constant 0.000000e+00 : f32
    %51 = vector.shape_cast %50 : vector<16x1xf32> to vector<16x1xf32>
    %52 = vector.broadcast %51 : vector<16x1xf32> to vector<16x128xf32>
    %53 = vector.broadcast %cst_7 : f32 to vector<16x128xf32>
    %54 = arith.select %49, %52, %53 : vector<16x128xi1>, vector<16x128xf32>
    %55 = arith.addf %46, %54 : vector<16x128xf32>
    %56 = vector.extract_strided_slice %0 {offsets = [0, 6], sizes = [16, 1], strides = [1, 1]} : vector<16x8xi32> to vector<16x1xi32>
    %57 = vector.broadcast %56 : vector<16x1xi32> to vector<16x128xi32>
    %58 = arith.cmpi eq, %57, %2 : vector<16x128xi32>
    %59 = vector.extract_strided_slice %1 {offsets = [0, 6], sizes = [16, 1], strides = [1, 1]} : vector<16x8xf32> to vector<16x1xf32>
    %cst_8 = arith.constant 0.000000e+00 : f32
    %60 = vector.shape_cast %59 : vector<16x1xf32> to vector<16x1xf32>
    %61 = vector.broadcast %60 : vector<16x1xf32> to vector<16x128xf32>
    %62 = vector.broadcast %cst_8 : f32 to vector<16x128xf32>
    %63 = arith.select %58, %61, %62 : vector<16x128xi1>, vector<16x128xf32>
    %64 = arith.addf %55, %63 : vector<16x128xf32>
    %65 = vector.extract_strided_slice %0 {offsets = [0, 7], sizes = [16, 1], strides = [1, 1]} : vector<16x8xi32> to vector<16x1xi32>
    %66 = vector.broadcast %65 : vector<16x1xi32> to vector<16x128xi32>
    %67 = arith.cmpi eq, %66, %2 : vector<16x128xi32>
    %68 = vector.extract_strided_slice %1 {offsets = [0, 7], sizes = [16, 1], strides = [1, 1]} : vector<16x8xf32> to vector<16x1xf32>
    %cst_9 = arith.constant 0.000000e+00 : f32
    %69 = vector.shape_cast %68 : vector<16x1xf32> to vector<16x1xf32>
    %70 = vector.broadcast %69 : vector<16x1xf32> to vector<16x128xf32>
    %71 = vector.broadcast %cst_9 : f32 to vector<16x128xf32>
    %72 = arith.select %67, %70, %71 : vector<16x128xi1>, vector<16x128xf32>
    %73 = arith.addf %64, %72 : vector<16x128xf32>
    %c0_10 = arith.constant 0 : index
    %c0_11 = arith.constant 0 : index
    %74 = vector.load %arg4[%c0_10, %c0_11] : memref<128x32xf32, #tpu.memory_space<vmem>>, vector<128x32xf32>
    %cst_12 = arith.constant dense<0.000000e+00> : vector<16x32xf32>
    %75 = tpu.matmul %73, %74, %cst_12 {dimension_numbers = #tpu.dot_dimension_numbers<[1], [0], [0], [1], [0, 0, 1, 1], [], []>} : vector<16x128xf32>, vector<128x32xf32>, vector<16x32xf32> -> vector<16x32xf32>
    %cst_13 = arith.constant dense<0.000000e+00> : vector<16xf32>
    %76 = vector.multi_reduction <add>, %1, %cst_13 [1] : vector<16x8xf32> to vector<16xf32>
    %77 = vector.shape_cast %76 : vector<16xf32> to vector<16x1xf32>
    %cst_14 = arith.constant 9.99999971E-10 : f32
    %78 = vector.broadcast %cst_14 : f32 to vector<16x1xf32>
    %79 = arith.addf %78, %77 : vector<16x1xf32>
    %80 = vector.broadcast %79 : vector<16x1xf32> to vector<16x32xf32>
    %81 = arith.divf %75, %80 : vector<16x32xf32>
    %c0_15 = arith.constant 0 : index
    %c0_16 = arith.constant 0 : index
    %82 = vector.load %arg5[%c0_15, %c0_16] : memref<32x16xf32, #tpu.memory_space<vmem>>, vector<32x16xf32>
    %cst_17 = arith.constant dense<0.000000e+00> : vector<16x16xf32>
    %83 = tpu.matmul %81, %82, %cst_17 {dimension_numbers = #tpu.dot_dimension_numbers<[1], [0], [0], [1], [0, 0, 1, 1], [], []>} : vector<16x32xf32>, vector<32x16xf32>, vector<16x16xf32> -> vector<16x16xf32>
    %c0_18 = arith.constant 0 : index
    %c0_19 = arith.constant 0 : index
    %84 = vector.load %arg6[%c0_18, %c0_19] : memref<1x16xf32, #tpu.memory_space<vmem>>, vector<1x16xf32>
    %85 = vector.broadcast %84 : vector<1x16xf32> to vector<16x16xf32>
    %86 = arith.addf %83, %85 : vector<16x16xf32>
    %c0_20 = arith.constant 0 : index
    %c0_21 = arith.constant 0 : index
    %87 = vector.load %arg3[%c0_20, %c0_21] : memref<16x3xf32, #tpu.memory_space<vmem>>, vector<16x3xf32>
    %c0_22 = arith.constant 0 : index
    %c0_23 = arith.constant 0 : index
    %88 = vector.load %arg7[%c0_22, %c0_23] : memref<3x16xf32, #tpu.memory_space<vmem>>, vector<3x16xf32>
    %89 = vector.extract_strided_slice %87 {offsets = [0, 0], sizes = [16, 1], strides = [1, 1]} : vector<16x3xf32> to vector<16x1xf32>
    %90 = vector.extract_strided_slice %88 {offsets = [0, 0], sizes = [1, 16], strides = [1, 1]} : vector<3x16xf32> to vector<1x16xf32>
    %91 = vector.broadcast %89 : vector<16x1xf32> to vector<16x16xf32>
    %92 = vector.broadcast %90 : vector<1x16xf32> to vector<16x16xf32>
    %93 = arith.mulf %91, %92 : vector<16x16xf32>
    %94 = vector.extract_strided_slice %87 {offsets = [0, 1], sizes = [16, 1], strides = [1, 1]} : vector<16x3xf32> to vector<16x1xf32>
    %95 = vector.extract_strided_slice %88 {offsets = [1, 0], sizes = [1, 16], strides = [1, 1]} : vector<3x16xf32> to vector<1x16xf32>
    %96 = vector.broadcast %94 : vector<16x1xf32> to vector<16x16xf32>
    %97 = vector.broadcast %95 : vector<1x16xf32> to vector<16x16xf32>
    %98 = arith.mulf %96, %97 : vector<16x16xf32>
    %99 = arith.addf %93, %98 : vector<16x16xf32>
    %100 = vector.extract_strided_slice %87 {offsets = [0, 2], sizes = [16, 1], strides = [1, 1]} : vector<16x3xf32> to vector<16x1xf32>
    %101 = vector.extract_strided_slice %88 {offsets = [2, 0], sizes = [1, 16], strides = [1, 1]} : vector<3x16xf32> to vector<1x16xf32>
    %102 = vector.broadcast %100 : vector<16x1xf32> to vector<16x16xf32>
    %103 = vector.broadcast %101 : vector<1x16xf32> to vector<16x16xf32>
    %104 = arith.mulf %102, %103 : vector<16x16xf32>
    %105 = arith.addf %99, %104 : vector<16x16xf32>
    %c0_24 = arith.constant 0 : index
    %c0_25 = arith.constant 0 : index
    %106 = vector.load %arg8[%c0_24, %c0_25] : memref<1x16xf32, #tpu.memory_space<vmem>>, vector<1x16xf32>
    %107 = vector.broadcast %106 : vector<1x16xf32> to vector<16x16xf32>
    %108 = arith.addf %105, %107 : vector<16x16xf32>
    %cst_26 = arith.constant 0.000000e+00 : f32
    %109 = vector.broadcast %cst_26 : f32 to vector<16x16xf32>
    %110 = arith.maximumf %108, %109 : vector<16x16xf32>
    %c0_27 = arith.constant 0 : index
    %c0_28 = arith.constant 0 : index
    %111 = vector.load %arg9[%c0_27, %c0_28] : memref<16x16xf32, #tpu.memory_space<vmem>>, vector<16x16xf32>
    %cst_29 = arith.constant dense<0.000000e+00> : vector<16x16xf32>
    %112 = tpu.matmul %110, %111, %cst_29 {dimension_numbers = #tpu.dot_dimension_numbers<[1], [0], [0], [1], [0, 0, 1, 1], [], []>} : vector<16x16xf32>, vector<16x16xf32>, vector<16x16xf32> -> vector<16x16xf32>
    %c0_30 = arith.constant 0 : index
    %c0_31 = arith.constant 0 : index
    %113 = vector.load %arg10[%c0_30, %c0_31] : memref<1x16xf32, #tpu.memory_space<vmem>>, vector<1x16xf32>
    %114 = vector.broadcast %113 : vector<1x16xf32> to vector<16x16xf32>
    %115 = arith.addf %112, %114 : vector<16x16xf32>
    %cst_32 = arith.constant 0.000000e+00 : f32
    %116 = vector.broadcast %cst_32 : f32 to vector<16x16xf32>
    %117 = arith.maximumf %86, %116 : vector<16x16xf32>
    %c0_33 = arith.constant 0 : index
    %c0_34 = arith.constant 0 : index
    %118 = vector.load %arg11[%c0_33, %c0_34] : memref<16x32xf32, #tpu.memory_space<vmem>>, vector<16x32xf32>
    %cst_35 = arith.constant dense<0.000000e+00> : vector<16x32xf32>
    %119 = tpu.matmul %117, %118, %cst_35 {dimension_numbers = #tpu.dot_dimension_numbers<[1], [0], [0], [1], [0, 0, 1, 1], [], []>} : vector<16x16xf32>, vector<16x32xf32>, vector<16x32xf32> -> vector<16x32xf32>
    %cst_36 = arith.constant 0.000000e+00 : f32
    %120 = vector.broadcast %cst_36 : f32 to vector<16x16xf32>
    %121 = arith.maximumf %115, %120 : vector<16x16xf32>
    %c0_37 = arith.constant 0 : index
    %c0_38 = arith.constant 0 : index
    %122 = vector.load %arg12[%c0_37, %c0_38] : memref<16x32xf32, #tpu.memory_space<vmem>>, vector<16x32xf32>
    %cst_39 = arith.constant dense<0.000000e+00> : vector<16x32xf32>
    %123 = tpu.matmul %121, %122, %cst_39 {dimension_numbers = #tpu.dot_dimension_numbers<[1], [0], [0], [1], [0, 0, 1, 1], [], []>} : vector<16x16xf32>, vector<16x32xf32>, vector<16x32xf32> -> vector<16x32xf32>
    %124 = arith.addf %119, %123 : vector<16x32xf32>
    %c0_40 = arith.constant 0 : index
    %c0_41 = arith.constant 0 : index
    %125 = vector.load %arg13[%c0_40, %c0_41] : memref<1x32xf32, #tpu.memory_space<vmem>>, vector<1x32xf32>
    %126 = vector.broadcast %125 : vector<1x32xf32> to vector<16x32xf32>
    %127 = arith.addf %124, %126 : vector<16x32xf32>
    %c0_42 = arith.constant 0 : index
    %c0_43 = arith.constant 0 : index
    %128 = vector.load %arg14[%c0_42, %c0_43] : memref<16x32xf32, #tpu.memory_space<vmem>>, vector<16x32xf32>
    tpu.vector_store %arg14[%c0_42, %c0_43], %127 {strides = array<i32>} : memref<16x32xf32, #tpu.memory_space<vmem>>, vector<16x32xf32>,
    return
  }
  func.func @transform_0(%arg0: i32) -> (i32, i32) {
    %c0_i32 = arith.constant 0 : i32
    %c0_i32_0 = arith.constant 0 : i32
    return %arg0, %c0_i32 : i32, i32
  }
  func.func @transform_1(%arg0: i32) -> (i32, i32) {
    %c0_i32 = arith.constant 0 : i32
    %c0_i32_0 = arith.constant 0 : i32
    return %arg0, %c0_i32 : i32, i32
  }
  func.func @transform_2(%arg0: i32) -> (i32, i32) {
    %c0_i32 = arith.constant 0 : i32
    %c0_i32_0 = arith.constant 0 : i32
    return %arg0, %c0_i32 : i32, i32
  }
  func.func @transform_3(%arg0: i32) -> (i32, i32) {
    %c0_i32 = arith.constant 0 : i32
    %c0_i32_0 = arith.constant 0 : i32
    %c0_i32_1 = arith.constant 0 : i32
    return %c0_i32, %c0_i32_0 : i32, i32
  }
  func.func @transform_4(%arg0: i32) -> (i32, i32) {
    %c0_i32 = arith.constant 0 : i32
    %c0_i32_0 = arith.constant 0 : i32
    %c0_i32_1 = arith.constant 0 : i32
    return %c0_i32, %c0_i32_0 : i32, i32
  }
  func.func @transform_5(%arg0: i32) -> (i32, i32) {
    %c0_i32 = arith.constant 0 : i32
    %c0_i32_0 = arith.constant 0 : i32
    %c0_i32_1 = arith.constant 0 : i32
    return %c0_i32, %c0_i32_0 : i32, i32
  }
  func.func @transform_6(%arg0: i32) -> (i32, i32) {
    %c0_i32 = arith.constant 0 : i32
    %c0_i32_0 = arith.constant 0 : i32
    %c0_i32_1 = arith.constant 0 : i32
    return %c0_i32, %c0_i32_0 : i32, i32
  }
  func.func @transform_7(%arg0: i32) -> (i32, i32) {
    %c0_i32 = arith.constant 0 : i32
    %c0_i32_0 = arith.constant 0 : i32
    %c0_i32_1 = arith.constant 0 : i32
    return %c0_i32, %c0_i32_0 : i32, i32
  }
  func.func @transform_8(%arg0: i32) -> (i32, i32) {
    %c0_i32 = arith.constant 0 : i32
    %c0_i32_0 = arith.constant 0 : i32
    %c0_i32_1 = arith.constant 0 : i32
    return %c0_i32, %c0_i32_0 : i32, i32
  }
  func.func @transform_9(%arg0: i32) -> (i32, i32) {
    %c0_i32 = arith.constant 0 : i32
    %c0_i32_0 = arith.constant 0 : i32
    %c0_i32_1 = arith.constant 0 : i32
    return %c0_i32, %c0_i32_0 : i32, i32
  }
  func.func @transform_10(%arg0: i32) -> (i32, i32) {
    %c0_i32 = arith.constant 0 : i32
    %c0_i32_0 = arith.constant 0 : i32
    %c0_i32_1 = arith.constant 0 : i32
    return %c0_i32, %c0_i32_0 : i32, i32
  }
  func.func @transform_11(%arg0: i32) -> (i32, i32) {
    %c0_i32 = arith.constant 0 : i32
    %c0_i32_0 = arith.constant 0 : i32
    %c0_i32_1 = arith.constant 0 : i32
    return %c0_i32, %c0_i32_0 : i32, i32
  }
  func.func @transform_12(%arg0: i32) -> (i32, i32) {
    %c0_i32 = arith.constant 0 : i32
    %c0_i32_0 = arith.constant 0 : i32
    %c0_i32_1 = arith.constant 0 : i32
    return %c0_i32, %c0_i32_0 : i32, i32
  }
  func.func @transform_13(%arg0: i32) -> (i32, i32) {
    %c0_i32 = arith.constant 0 : i32
    %c0_i32_0 = arith.constant 0 : i32
    return %arg0, %c0_i32 : i32, i32
  }
}

module attributes {stable_mosaic.version = 11 : i64} {
  func.func @_encode_kernel(%arg0: i32, %arg1: memref<16x8xi32, #tpu.memory_space<vmem>>, %arg2: memref<16x8xf32, #tpu.memory_space<vmem>>, %arg3: memref<16x3xf32, #tpu.memory_space<vmem>>, %arg4: memref<128x32xf32, #tpu.memory_space<vmem>>, %arg5: memref<32x16xf32, #tpu.memory_space<vmem>>, %arg6: memref<1x16xf32, #tpu.memory_space<vmem>>, %arg7: memref<3x16xf32, #tpu.memory_space<vmem>>, %arg8: memref<1x16xf32, #tpu.memory_space<vmem>>, %arg9: memref<16x16xf32, #tpu.memory_space<vmem>>, %arg10: memref<1x16xf32, #tpu.memory_space<vmem>>, %arg11: memref<16x32xf32, #tpu.memory_space<vmem>>, %arg12: memref<16x32xf32, #tpu.memory_space<vmem>>, %arg13: memref<1x32xf32, #tpu.memory_space<vmem>>, %arg14: memref<16x32xf32, #tpu.memory_space<vmem>>) attributes {dimension_semantics = [#tpu.dimension_semantics<parallel>], iteration_bounds = array<i64: 1>, scalar_prefetch = 0 : i64, scratch_operands = 0 : i64, tpu.core_type = #tpu.core_type<tc>, window_params = [{transform_indices = @transform_0, window_bounds = array<i64: 16, 8>}, {transform_indices = @transform_1, window_bounds = array<i64: 16, 8>}, {transform_indices = @transform_2, window_bounds = array<i64: 16, 3>}, {pipeline_mode = #tpu.pipeline_mode<synchronous>, transform_indices = @transform_3, window_bounds = array<i64: 128, 32>}, {pipeline_mode = #tpu.pipeline_mode<synchronous>, transform_indices = @transform_4, window_bounds = array<i64: 32, 16>}, {pipeline_mode = #tpu.pipeline_mode<synchronous>, transform_indices = @transform_5, window_bounds = array<i64: 1, 16>}, {pipeline_mode = #tpu.pipeline_mode<synchronous>, transform_indices = @transform_6, window_bounds = array<i64: 3, 16>}, {pipeline_mode = #tpu.pipeline_mode<synchronous>, transform_indices = @transform_7, window_bounds = array<i64: 1, 16>}, {pipeline_mode = #tpu.pipeline_mode<synchronous>, transform_indices = @transform_8, window_bounds = array<i64: 16, 16>}, {pipeline_mode = #tpu.pipeline_mode<synchronous>, transform_indices = @transform_9, window_bounds = array<i64: 1, 16>}, {pipeline_mode = #tpu.pipeline_mode<synchronous>, transform_indices = @transform_10, window_bounds = array<i64: 16, 32>}, {pipeline_mode = #tpu.pipeline_mode<synchronous>, transform_indices = @transform_11, window_bounds = array<i64: 16, 32>}, {pipeline_mode = #tpu.pipeline_mode<synchronous>, transform_indices = @transform_12, window_bounds = array<i64: 1, 32>}, {transform_indices = @transform_13, window_bounds = array<i64: 16, 32>}]} {
    %c0 = arith.constant 0 : index
    %c0_0 = arith.constant 0 : index
    %0 = vector.load %arg1[%c0, %c0_0] : memref<16x8xi32, #tpu.memory_space<vmem>>, vector<16x8xi32>
    %c0_1 = arith.constant 0 : index
    %c0_2 = arith.constant 0 : index
    %1 = vector.load %arg2[%c0_1, %c0_2] : memref<16x8xf32, #tpu.memory_space<vmem>>, vector<16x8xf32>
    %2 = tpu.iota {dimensions = array<i32: 1>} : vector<16x128xi32>
    %3 = vector.extract_strided_slice %0 {offsets = [0, 0], sizes = [16, 1], strides = [1, 1]} : vector<16x8xi32> to vector<16x1xi32>
    %4 = vector.broadcast %3 : vector<16x1xi32> to vector<16x128xi32>
    %5 = arith.cmpi eq, %4, %2 : vector<16x128xi32>
    %6 = vector.extract_strided_slice %1 {offsets = [0, 0], sizes = [16, 1], strides = [1, 1]} : vector<16x8xf32> to vector<16x1xf32>
    %cst = arith.constant 0.000000e+00 : f32
    %7 = vector.shape_cast %6 : vector<16x1xf32> to vector<16x1xf32>
    %8 = vector.broadcast %7 : vector<16x1xf32> to vector<16x128xf32>
    %9 = vector.broadcast %cst : f32 to vector<16x128xf32>
    %10 = arith.select %5, %8, %9 : vector<16x128xi1>, vector<16x128xf32>
    %11 = vector.extract_strided_slice %0 {offsets = [0, 1], sizes = [16, 1], strides = [1, 1]} : vector<16x8xi32> to vector<16x1xi32>
    %12 = vector.broadcast %11 : vector<16x1xi32> to vector<16x128xi32>
    %13 = arith.cmpi eq, %12, %2 : vector<16x128xi32>
    %14 = vector.extract_strided_slice %1 {offsets = [0, 1], sizes = [16, 1], strides = [1, 1]} : vector<16x8xf32> to vector<16x1xf32>
    %cst_3 = arith.constant 0.000000e+00 : f32
    %15 = vector.shape_cast %14 : vector<16x1xf32> to vector<16x1xf32>
    %16 = vector.broadcast %15 : vector<16x1xf32> to vector<16x128xf32>
    %17 = vector.broadcast %cst_3 : f32 to vector<16x128xf32>
    %18 = arith.select %13, %16, %17 : vector<16x128xi1>, vector<16x128xf32>
    %19 = arith.addf %10, %18 : vector<16x128xf32>
    %20 = vector.extract_strided_slice %0 {offsets = [0, 2], sizes = [16, 1], strides = [1, 1]} : vector<16x8xi32> to vector<16x1xi32>
    %21 = vector.broadcast %20 : vector<16x1xi32> to vector<16x128xi32>
    %22 = arith.cmpi eq, %21, %2 : vector<16x128xi32>
    %23 = vector.extract_strided_slice %1 {offsets = [0, 2], sizes = [16, 1], strides = [1, 1]} : vector<16x8xf32> to vector<16x1xf32>
    %cst_4 = arith.constant 0.000000e+00 : f32
    %24 = vector.shape_cast %23 : vector<16x1xf32> to vector<16x1xf32>
    %25 = vector.broadcast %24 : vector<16x1xf32> to vector<16x128xf32>
    %26 = vector.broadcast %cst_4 : f32 to vector<16x128xf32>
    %27 = arith.select %22, %25, %26 : vector<16x128xi1>, vector<16x128xf32>
    %28 = arith.addf %19, %27 : vector<16x128xf32>
    %29 = vector.extract_strided_slice %0 {offsets = [0, 3], sizes = [16, 1], strides = [1, 1]} : vector<16x8xi32> to vector<16x1xi32>
    %30 = vector.broadcast %29 : vector<16x1xi32> to vector<16x128xi32>
    %31 = arith.cmpi eq, %30, %2 : vector<16x128xi32>
    %32 = vector.extract_strided_slice %1 {offsets = [0, 3], sizes = [16, 1], strides = [1, 1]} : vector<16x8xf32> to vector<16x1xf32>
    %cst_5 = arith.constant 0.000000e+00 : f32
    %33 = vector.shape_cast %32 : vector<16x1xf32> to vector<16x1xf32>
    %34 = vector.broadcast %33 : vector<16x1xf32> to vector<16x128xf32>
    %35 = vector.broadcast %cst_5 : f32 to vector<16x128xf32>
    %36 = arith.select %31, %34, %35 : vector<16x128xi1>, vector<16x128xf32>
    %37 = arith.addf %28, %36 : vector<16x128xf32>
    %38 = vector.extract_strided_slice %0 {offsets = [0, 4], sizes = [16, 1], strides = [1, 1]} : vector<16x8xi32> to vector<16x1xi32>
    %39 = vector.broadcast %38 : vector<16x1xi32> to vector<16x128xi32>
    %40 = arith.cmpi eq, %39, %2 : vector<16x128xi32>
    %41 = vector.extract_strided_slice %1 {offsets = [0, 4], sizes = [16, 1], strides = [1, 1]} : vector<16x8xf32> to vector<16x1xf32>
    %cst_6 = arith.constant 0.000000e+00 : f32
    %42 = vector.shape_cast %41 : vector<16x1xf32> to vector<16x1xf32>
    %43 = vector.broadcast %42 : vector<16x1xf32> to vector<16x128xf32>
    %44 = vector.broadcast %cst_6 : f32 to vector<16x128xf32>
    %45 = arith.select %40, %43, %44 : vector<16x128xi1>, vector<16x128xf32>
    %46 = arith.addf %37, %45 : vector<16x128xf32>
    %47 = vector.extract_strided_slice %0 {offsets = [0, 5], sizes = [16, 1], strides = [1, 1]} : vector<16x8xi32> to vector<16x1xi32>
    %48 = vector.broadcast %47 : vector<16x1xi32> to vector<16x128xi32>
    %49 = arith.cmpi eq, %48, %2 : vector<16x128xi32>
    %50 = vector.extract_strided_slice %1 {offsets = [0, 5], sizes = [16, 1], strides = [1, 1]} : vector<16x8xf32> to vector<16x1xf32>
    %cst_7 = arith.constant 0.000000e+00 : f32
    %51 = vector.shape_cast %50 : vector<16x1xf32> to vector<16x1xf32>
    %52 = vector.broadcast %51 : vector<16x1xf32> to vector<16x128xf32>
    %53 = vector.broadcast %cst_7 : f32 to vector<16x128xf32>
    %54 = arith.select %49, %52, %53 : vector<16x128xi1>, vector<16x128xf32>
    %55 = arith.addf %46, %54 : vector<16x128xf32>
    %56 = vector.extract_strided_slice %0 {offsets = [0, 6], sizes = [16, 1], strides = [1, 1]} : vector<16x8xi32> to vector<16x1xi32>
    %57 = vector.broadcast %56 : vector<16x1xi32> to vector<16x128xi32>
    %58 = arith.cmpi eq, %57, %2 : vector<16x128xi32>
    %59 = vector.extract_strided_slice %1 {offsets = [0, 6], sizes = [16, 1], strides = [1, 1]} : vector<16x8xf32> to vector<16x1xf32>
    %cst_8 = arith.constant 0.000000e+00 : f32
    %60 = vector.shape_cast %59 : vector<16x1xf32> to vector<16x1xf32>
    %61 = vector.broadcast %60 : vector<16x1xf32> to vector<16x128xf32>
    %62 = vector.broadcast %cst_8 : f32 to vector<16x128xf32>
    %63 = arith.select %58, %61, %62 : vector<16x128xi1>, vector<16x128xf32>
    %64 = arith.addf %55, %63 : vector<16x128xf32>
    %65 = vector.extract_strided_slice %0 {offsets = [0, 7], sizes = [16, 1], strides = [1, 1]} : vector<16x8xi32> to vector<16x1xi32>
    %66 = vector.broadcast %65 : vector<16x1xi32> to vector<16x128xi32>
    %67 = arith.cmpi eq, %66, %2 : vector<16x128xi32>
    %68 = vector.extract_strided_slice %1 {offsets = [0, 7], sizes = [16, 1], strides = [1, 1]} : vector<16x8xf32> to vector<16x1xf32>
    %cst_9 = arith.constant 0.000000e+00 : f32
    %69 = vector.shape_cast %68 : vector<16x1xf32> to vector<16x1xf32>
    %70 = vector.broadcast %69 : vector<16x1xf32> to vector<16x128xf32>
    %71 = vector.broadcast %cst_9 : f32 to vector<16x128xf32>
    %72 = arith.select %67, %70, %71 : vector<16x128xi1>, vector<16x128xf32>
    %73 = arith.addf %64, %72 : vector<16x128xf32>
    %c0_10 = arith.constant 0 : index
    %c0_11 = arith.constant 0 : index
    %74 = vector.load %arg4[%c0_10, %c0_11] : memref<128x32xf32, #tpu.memory_space<vmem>>, vector<128x32xf32>
    %cst_12 = arith.constant dense<0.000000e+00> : vector<16x32xf32>
    %75 = tpu.matmul %73, %74, %cst_12 {dimension_numbers = #tpu.dot_dimension_numbers<[1], [0], [0], [1], [0, 0, 1, 1], [], []>} : vector<16x128xf32>, vector<128x32xf32>, vector<16x32xf32> -> vector<16x32xf32>
    %cst_13 = arith.constant dense<0.000000e+00> : vector<16xf32>
    %76 = vector.multi_reduction <add>, %1, %cst_13 [1] : vector<16x8xf32> to vector<16xf32>
    %77 = vector.shape_cast %76 : vector<16xf32> to vector<16x1xf32>
    %cst_14 = arith.constant 9.99999971E-10 : f32
    %78 = vector.broadcast %cst_14 : f32 to vector<16x1xf32>
    %79 = arith.addf %78, %77 : vector<16x1xf32>
    %80 = vector.broadcast %79 : vector<16x1xf32> to vector<16x32xf32>
    %81 = arith.divf %75, %80 : vector<16x32xf32>
    %c0_15 = arith.constant 0 : index
    %c0_16 = arith.constant 0 : index
    %82 = vector.load %arg5[%c0_15, %c0_16] : memref<32x16xf32, #tpu.memory_space<vmem>>, vector<32x16xf32>
    %cst_17 = arith.constant dense<0.000000e+00> : vector<16x16xf32>
    %83 = tpu.matmul %81, %82, %cst_17 {dimension_numbers = #tpu.dot_dimension_numbers<[1], [0], [0], [1], [0, 0, 1, 1], [], []>} : vector<16x32xf32>, vector<32x16xf32>, vector<16x16xf32> -> vector<16x16xf32>
    %c0_18 = arith.constant 0 : index
    %c0_19 = arith.constant 0 : index
    %84 = vector.load %arg6[%c0_18, %c0_19] : memref<1x16xf32, #tpu.memory_space<vmem>>, vector<1x16xf32>
    %85 = vector.broadcast %84 : vector<1x16xf32> to vector<16x16xf32>
    %86 = arith.addf %83, %85 : vector<16x16xf32>
    %c0_20 = arith.constant 0 : index
    %c0_21 = arith.constant 0 : index
    %87 = vector.load %arg3[%c0_20, %c0_21] : memref<16x3xf32, #tpu.memory_space<vmem>>, vector<16x3xf32>
    %c0_22 = arith.constant 0 : index
    %c0_23 = arith.constant 0 : index
    %88 = vector.load %arg7[%c0_22, %c0_23] : memref<3x16xf32, #tpu.memory_space<vmem>>, vector<3x16xf32>
    %89 = vector.extract_strided_slice %87 {offsets = [0, 0], sizes = [16, 1], strides = [1, 1]} : vector<16x3xf32> to vector<16x1xf32>
    %90 = vector.extract_strided_slice %88 {offsets = [0, 0], sizes = [1, 16], strides = [1, 1]} : vector<3x16xf32> to vector<1x16xf32>
    %91 = vector.broadcast %89 : vector<16x1xf32> to vector<16x16xf32>
    %92 = vector.broadcast %90 : vector<1x16xf32> to vector<16x16xf32>
    %93 = arith.mulf %91, %92 : vector<16x16xf32>
    %94 = vector.extract_strided_slice %87 {offsets = [0, 1], sizes = [16, 1], strides = [1, 1]} : vector<16x3xf32> to vector<16x1xf32>
    %95 = vector.extract_strided_slice %88 {offsets = [1, 0], sizes = [1, 16], strides = [1, 1]} : vector<3x16xf32> to vector<1x16xf32>
    %96 = vector.broadcast %94 : vector<16x1xf32> to vector<16x16xf32>
    %97 = vector.broadcast %95 : vector<1x16xf32> to vector<16x16xf32>
    %98 = arith.mulf %96, %97 : vector<16x16xf32>
    %99 = arith.addf %93, %98 : vector<16x16xf32>
    %100 = vector.extract_strided_slice %87 {offsets = [0, 2], sizes = [16, 1], strides = [1, 1]} : vector<16x3xf32> to vector<16x1xf32>
    %101 = vector.extract_strided_slice %88 {offsets = [2, 0], sizes = [1, 16], strides = [1, 1]} : vector<3x16xf32> to vector<1x16xf32>
    %102 = vector.broadcast %100 : vector<16x1xf32> to vector<16x16xf32>
    %103 = vector.broadcast %101 : vector<1x16xf32> to vector<16x16xf32>
    %104 = arith.mulf %102, %103 : vector<16x16xf32>
    %105 = arith.addf %99, %104 : vector<16x16xf32>
    %c0_24 = arith.constant 0 : index
    %c0_25 = arith.constant 0 : index
    %106 = vector.load %arg8[%c0_24, %c0_25] : memref<1x16xf32, #tpu.memory_space<vmem>>, vector<1x16xf32>
    %107 = vector.broadcast %106 : vector<1x16xf32> to vector<16x16xf32>
    %108 = arith.addf %105, %107 : vector<16x16xf32>
    %cst_26 = arith.constant 0.000000e+00 : f32
    %109 = vector.broadcast %cst_26 : f32 to vector<16x16xf32>
    %110 = arith.maximumf %108, %109 : vector<16x16xf32>
    %c0_27 = arith.constant 0 : index
    %c0_28 = arith.constant 0 : index
    %111 = vector.load %arg9[%c0_27, %c0_28] : memref<16x16xf32, #tpu.memory_space<vmem>>, vector<16x16xf32>
    %cst_29 = arith.constant dense<0.000000e+00> : vector<16x16xf32>
    %112 = tpu.matmul %110, %111, %cst_29 {dimension_numbers = #tpu.dot_dimension_numbers<[1], [0], [0], [1], [0, 0, 1, 1], [], []>} : vector<16x16xf32>, vector<16x16xf32>, vector<16x16xf32> -> vector<16x16xf32>
    %c0_30 = arith.constant 0 : index
    %c0_31 = arith.constant 0 : index
    %113 = vector.load %arg10[%c0_30, %c0_31] : memref<1x16xf32, #tpu.memory_space<vmem>>, vector<1x16xf32>
    %114 = vector.broadcast %113 : vector<1x16xf32> to vector<16x16xf32>
    %115 = arith.addf %112, %114 : vector<16x16xf32>
    %cst_32 = arith.constant 0.000000e+00 : f32
    %116 = vector.broadcast %cst_32 : f32 to vector<16x16xf32>
    %117 = arith.maximumf %86, %116 : vector<16x16xf32>
    %c0_33 = arith.constant 0 : index
    %c0_34 = arith.constant 0 : index
    %118 = vector.load %arg11[%c0_33, %c0_34] : memref<16x32xf32, #tpu.memory_space<vmem>>, vector<16x32xf32>
    %cst_35 = arith.constant dense<0.000000e+00> : vector<16x32xf32>
    %119 = tpu.matmul %117, %118, %cst_35 {dimension_numbers = #tpu.dot_dimension_numbers<[1], [0], [0], [1], [0, 0, 1, 1], [], []>} : vector<16x16xf32>, vector<16x32xf32>, vector<16x32xf32> -> vector<16x32xf32>
    %cst_36 = arith.constant 0.000000e+00 : f32
    %120 = vector.broadcast %cst_36 : f32 to vector<16x16xf32>
    %121 = arith.maximumf %115, %120 : vector<16x16xf32>
    %c0_37 = arith.constant 0 : index
    %c0_38 = arith.constant 0 : index
    %122 = vector.load %arg12[%c0_37, %c0_38] : memref<16x32xf32, #tpu.memory_space<vmem>>, vector<16x32xf32>
    %cst_39 = arith.constant dense<0.000000e+00> : vector<16x32xf32>
    %123 = tpu.matmul %121, %122, %cst_39 {dimension_numbers = #tpu.dot_dimension_numbers<[1], [0], [0], [1], [0, 0, 1, 1], [], []>} : vector<16x16xf32>, vector<16x32xf32>, vector<16x32xf32> -> vector<16x32xf32>
    %124 = arith.addf %119, %123 : vector<16x32xf32>
    %c0_40 = arith.constant 0 : index
    %c0_41 = arith.constant 0 : index
    %125 = vector.load %arg13[%c0_40, %c0_41] : memref<1x32xf32, #tpu.memory_space<vmem>>, vector<1x32xf32>
    %126 = vector.broadcast %125 : vector<1x32xf32> to vector<16x32xf32>
    %127 = arith.addf %124, %126 : vector<16x32xf32>
    %c0_42 = arith.constant 0 : index
    %c0_43 = arith.constant 0 : index
    %128 = vector.load %arg14[%c0_42, %c0_43] : memref<16x32xf32, #tpu.memory_space<vmem>>, vector<16x32xf32>
    tpu.vector_store %arg14[%c0_42, %c0_43], %127 {strides = array<i32>} : memref<16x32xf32, #tpu.memory_space<vmem>>, vector<16x32xf32>,
    return
  }
  func.func @transform_0(%arg0: i32) -> (i32, i32) {
    %c0_i32 = arith.constant 0 : i32
    %c0_i32_0 = arith.constant 0 : i32
    return %arg0, %c0_i32 : i32, i32
  }
  func.func @transform_1(%arg0: i32) -> (i32, i32) {
    %c0_i32 = arith.constant 0 : i32
    %c0_i32_0 = arith.constant 0 : i32
    return %arg0, %c0_i32 : i32, i32
  }
  func.func @transform_2(%arg0: i32) -> (i32, i32) {
    %c0_i32 = arith.constant 0 : i32
    %c0_i32_0 = arith.constant 0 : i32
    return %arg0, %c0_i32 : i32, i32
  }
  func.func @transform_3(%arg0: i32) -> (i32, i32) {
    %c0_i32 = arith.constant 0 : i32
    %c0_i32_0 = arith.constant 0 : i32
    %c0_i32_1 = arith.constant 0 : i32
    return %c0_i32, %c0_i32_0 : i32, i32
  }
  func.func @transform_4(%arg0: i32) -> (i32, i32) {
    %c0_i32 = arith.constant 0 : i32
    %c0_i32_0 = arith.constant 0 : i32
    %c0_i32_1 = arith.constant 0 : i32
    return %c0_i32, %c0_i32_0 : i32, i32
  }
  func.func @transform_5(%arg0: i32) -> (i32, i32) {
    %c0_i32 = arith.constant 0 : i32
    %c0_i32_0 = arith.constant 0 : i32
    %c0_i32_1 = arith.constant 0 : i32
    return %c0_i32, %c0_i32_0 : i32, i32
  }
  func.func @transform_6(%arg0: i32) -> (i32, i32) {
    %c0_i32 = arith.constant 0 : i32
    %c0_i32_0 = arith.constant 0 : i32
    %c0_i32_1 = arith.constant 0 : i32
    return %c0_i32, %c0_i32_0 : i32, i32
  }
  func.func @transform_7(%arg0: i32) -> (i32, i32) {
    %c0_i32 = arith.constant 0 : i32
    %c0_i32_0 = arith.constant 0 : i32
    %c0_i32_1 = arith.constant 0 : i32
    return %c0_i32, %c0_i32_0 : i32, i32
  }
  func.func @transform_8(%arg0: i32) -> (i32, i32) {
    %c0_i32 = arith.constant 0 : i32
    %c0_i32_0 = arith.constant 0 : i32
    %c0_i32_1 = arith.constant 0 : i32
    return %c0_i32, %c0_i32_0 : i32, i32
  }
  func.func @transform_9(%arg0: i32) -> (i32, i32) {
    %c0_i32 = arith.constant 0 : i32
    %c0_i32_0 = arith.constant 0 : i32
    %c0_i32_1 = arith.constant 0 : i32
    return %c0_i32, %c0_i32_0 : i32, i32
  }
  func.func @transform_10(%arg0: i32) -> (i32, i32) {
    %c0_i32 = arith.constant 0 : i32
    %c0_i32_0 = arith.constant 0 : i32
    %c0_i32_1 = arith.constant 0 : i32
    return %c0_i32, %c0_i32_0 : i32, i32
  }
  func.func @transform_11(%arg0: i32) -> (i32, i32) {
    %c0_i32 = arith.constant 0 : i32
    %c0_i32_0 = arith.constant 0 : i32
    %c0_i32_1 = arith.constant 0 : i32
    return %c0_i32, %c0_i32_0 : i32, i32
  }
  func.func @transform_12(%arg0: i32) -> (i32, i32) {
    %c0_i32 = arith.constant 0 : i32
    %c0_i32_0 = arith.constant 0 : i32
    %c0_i32_1 = arith.constant 0 : i32
    return %c0_i32, %c0_i32_0 : i32, i32
  }
  func.func @transform_13(%arg0: i32) -> (i32, i32) {
    %c0_i32 = arith.constant 0 : i32
    %c0_i32_0 = arith.constant 0 : i32
    return %arg0, %c0_i32 : i32, i32
  }
}

</mosaic_0001>

<llo_original>
// kernel: tpu_custom_call.1
$region0: #{tpu_custom_call.1}
  #allocation0 [shape = 'u32[]', space=smem, size = 0x4, offset = 0x4, fixed_abs, tag = 'smem constant byte address 0x4 - core index']
  #allocation1 [shape = 'u32[144,128]{1,0:T(1,128)}', space=vmem, size = 0x12000, scoped, tag = 'internal scratch']
  %s0 = inlined_call_operand.vmem [shape: s32[16,8], index: 0, kind: input, shape index: {}]
  %s1 = inlined_call_operand.vmem [shape: f32[16,8], index: 1, kind: input, shape index: {}]
  %s2 = inlined_call_operand.vmem [shape: f32[16,3], index: 2, kind: input, shape index: {}]
  %s3 = inlined_call_operand.vmem [shape: f32[128,32], index: 3, kind: input, shape index: {}]
  %s4 = inlined_call_operand.vmem [shape: f32[32,16], index: 4, kind: input, shape index: {}]
  %s5 = inlined_call_operand.vmem [shape: f32[1,16], index: 5, kind: input, shape index: {}]
  %s6 = inlined_call_operand.vmem [shape: f32[3,16], index: 6, kind: input, shape index: {}]
  %s7 = inlined_call_operand.vmem [shape: f32[1,16], index: 7, kind: input, shape index: {}]
  %s8 = inlined_call_operand.vmem [shape: f32[16,16], index: 8, kind: input, shape index: {}]
  %s9 = inlined_call_operand.vmem [shape: f32[1,16], index: 9, kind: input, shape index: {}]
  %s10 = inlined_call_operand.vmem [shape: f32[16,32], index: 10, kind: input, shape index: {}]
  %s11 = inlined_call_operand.vmem [shape: f32[16,32], index: 11, kind: input, shape index: {}]
  %s12 = inlined_call_operand.vmem [shape: f32[1,32], index: 12, kind: input, shape index: {}]
  %s13 = inlined_call_operand.hbm [shape: f32[16,32], index: 13, kind: output, shape index: {}]
  %s14 = sld [smem:[#allocation0]]
  $region62: #{tpu_custom_call.1} parent=0
    _
  %s16 = ssub.s32 1, %s14
  %s17 = scalar_select 0, %s16, %s14
  $region1: #{tpu_custom_call.1} parent=0
    #allocation2 [shape = 'u8[8192]{0}', space=vmem, size = 0x2000, scoped, tag = 'output window, operand 0, single buffered']
    #allocation3 [shape = 's32[1]{0}', space=sflag, size = 0x4, scoped, tag = 'scoped memory for tpu_custom_call.1']
    %18 = vsyncpa [#allocation3], 0
    // Predicated region
    $region2: #{tpu_custom_call.1} parent=1 // pred_check
      _
    $region3: #{tpu_custom_call.1} parent=1 // pred_check_branch
      %20 = sbr.rel (0) target = $region5
    $region4: #{tpu_custom_call.1} parent=1 // pred_region
      _
    $region5: #{tpu_custom_call.1} parent=1 // pred_fallthru
      _
    // Predicated region
    $region6: #{tpu_custom_call.1} parent=1 // pred_check
      _
    $region7: #{tpu_custom_call.1} parent=1 // pred_check_branch
      %22 = sbr.rel (0) target = $region9
    $region8: #{tpu_custom_call.1} parent=1 // pred_region
      _
    $region9: #{tpu_custom_call.1} parent=1 // pred_fallthru
      _
    // Predicated region
    $region10: #{tpu_custom_call.1} parent=1 // pred_check
      _
    $region11: #{tpu_custom_call.1} parent=1 // pred_check_branch
      %24 = sbr.rel (0) target = $region13
    $region12: #{tpu_custom_call.1} parent=1 // pred_region
      _
    $region13: #{tpu_custom_call.1} parent=1 // pred_fallthru
      _
    // Predicated region
    $region14: #{tpu_custom_call.1} parent=1 // pred_check
      _
    $region15: #{tpu_custom_call.1} parent=1 // pred_check_branch
      %26 = sbr.rel (0) target = $region17
    $region16: #{tpu_custom_call.1} parent=1 // pred_region
      _
    $region17: #{tpu_custom_call.1} parent=1 // pred_fallthru
      _
    // Predicated region
    $region18: #{tpu_custom_call.1} parent=1 // pred_check
      _
    $region19: #{tpu_custom_call.1} parent=1 // pred_check_branch
      %28 = sbr.rel (0) target = $region21
    $region20: #{tpu_custom_call.1} parent=1 // pred_region
      _
    $region21: #{tpu_custom_call.1} parent=1 // pred_fallthru
      _
    // Predicated region
    $region22: #{tpu_custom_call.1} parent=1 // pred_check
      _
    $region23: #{tpu_custom_call.1} parent=1 // pred_check_branch
      %30 = sbr.rel (0) target = $region25
    $region24: #{tpu_custom_call.1} parent=1 // pred_region
      _
    $region25: #{tpu_custom_call.1} parent=1 // pred_fallthru
      _
    // Predicated region
    $region26: #{tpu_custom_call.1} parent=1 // pred_check
      _
    $region27: #{tpu_custom_call.1} parent=1 // pred_check_branch
      %32 = sbr.rel (0) target = $region29
    $region28: #{tpu_custom_call.1} parent=1 // pred_region
      _
    $region29: #{tpu_custom_call.1} parent=1 // pred_fallthru
      _
    // Predicated region
    $region30: #{tpu_custom_call.1} parent=1 // pred_check
      _
    $region31: #{tpu_custom_call.1} parent=1 // pred_check_branch
      %34 = sbr.rel (0) target = $region33
    $region32: #{tpu_custom_call.1} parent=1 // pred_region
      _
    $region33: #{tpu_custom_call.1} parent=1 // pred_fallthru
      _
    // Predicated region
    $region34: #{tpu_custom_call.1} parent=1 // pred_check
      _
    $region35: #{tpu_custom_call.1} parent=1 // pred_check_branch
      %36 = sbr.rel (0) target = $region37
    $region36: #{tpu_custom_call.1} parent=1 // pred_region
      _
    $region37: #{tpu_custom_call.1} parent=1 // pred_fallthru
      _
    // Predicated region
    $region38: #{tpu_custom_call.1} parent=1 // pred_check
      _
    $region39: #{tpu_custom_call.1} parent=1 // pred_check_branch
      %38 = sbr.rel (0) target = $region41
    $region40: #{tpu_custom_call.1} parent=1 // pred_region
      _
    $region41: #{tpu_custom_call.1} parent=1 // pred_fallthru
      _
    // Predicated region
    $region42: #{tpu_custom_call.1} parent=1 // pred_check
      _
    $region43: #{tpu_custom_call.1} parent=1 // pred_check_branch
      %40 = sbr.rel (0) target = $region45
    $region44: #{tpu_custom_call.1} parent=1 // pred_region
      _
    $region45: #{tpu_custom_call.1} parent=1 // pred_fallthru
      _
    // Predicated region
    $region46: #{tpu_custom_call.1} parent=1 // pred_check
      _
    $region47: #{tpu_custom_call.1} parent=1 // pred_check_branch
      %42 = sbr.rel (0) target = $region49
    $region48: #{tpu_custom_call.1} parent=1 // pred_region
      _
    $region49: #{tpu_custom_call.1} parent=1 // pred_fallthru
      _
    // Predicated region
    $region50: #{tpu_custom_call.1} parent=1 // pred_check
      _
    $region51: #{tpu_custom_call.1} parent=1 // pred_check_branch
      %44 = sbr.rel (0) target = $region53
    $region52: #{tpu_custom_call.1} parent=1 // pred_region
      _
    $region53: #{tpu_custom_call.1} parent=1 // pred_fallthru
      _
    %v45 = vld [vmem:[%s0] sm:$0xff]
    %v46 = vld [vmem:[%s0 + $0x8] sm:$0xff]
    %v47 = vld [vmem:[%s1] sm:$0xff]
    %v48 = vld [vmem:[%s1 + $0x8] sm:$0xff]
    %v49 = vlaneseq
    %v50 = vand.u32 %v49, 127
    %51 = vset.pattern.permute.xlu0 0
    %52 = vperm.xlu0 %51, %v45
    %v53 = vpop.permute.xlu0 %52
    %54 = vset.pattern.permute.xlu0 0
    %55 = vperm.xlu0 %54, %v46
    %v56 = vpop.permute.xlu0 %55
    %vm57 = vcmp.eq.s32.totalorder %v53, %v50
    %vm58 = vcmp.eq.s32.totalorder %v56, %v50
    %60 = vset.pattern.permute.xlu0 0
    %61 = vperm.xlu0 %60, %v47
    %v62 = vpop.permute.xlu0 %61
    %65 = vset.pattern.permute.xlu0 0
    %66 = vperm.xlu0 %65, %v48
    %v67 = vpop.permute.xlu0 %66
    %v69 = vsel %vm57, %v62, 0.0
    %v70 = vsel %vm58, %v67, 0.0
    %71 = vset.pattern.permute.xlu0 1
    %72 = vperm.xlu0 %71, %v45
    %v73 = vpop.permute.xlu0 %72
    %74 = vset.pattern.permute.xlu0 1
    %75 = vperm.xlu0 %74, %v46
    %v76 = vpop.permute.xlu0 %75
    %vm77 = vcmp.eq.s32.totalorder %v73, %v50
    %vm78 = vcmp.eq.s32.totalorder %v76, %v50
    %79 = vset.pattern.permute.xlu0 1
    %80 = vperm.xlu0 %79, %v47
    %v81 = vpop.permute.xlu0 %80
    %83 = vset.pattern.permute.xlu0 1
    %84 = vperm.xlu0 %83, %v48
    %v85 = vpop.permute.xlu0 %84
    %v87 = vsel %vm77, %v81, 0.0
    %v88 = vsel %vm78, %v85, 0.0
    %v89 = vadd.f32 %v69, %v87
    %v90 = vadd.f32 %v70, %v88
    %91 = vset.pattern.permute.xlu0 2
    %92 = vperm.xlu0 %91, %v45
    %v93 = vpop.permute.xlu0 %92
    %94 = vset.pattern.permute.xlu0 2
    %95 = vperm.xlu0 %94, %v46
    %v96 = vpop.permute.xlu0 %95
    %vm97 = vcmp.eq.s32.totalorder %v93, %v50
    %vm98 = vcmp.eq.s32.totalorder %v96, %v50
    %99 = vset.pattern.permute.xlu0 2
    %100 = vperm.xlu0 %99, %v47
    %v101 = vpop.permute.xlu0 %100
    %103 = vset.pattern.permute.xlu0 2
    %104 = vperm.xlu0 %103, %v48
    %v105 = vpop.permute.xlu0 %104
    %v107 = vsel %vm97, %v101, 0.0
    %v108 = vsel %vm98, %v105, 0.0
    %v109 = vadd.f32 %v89, %v107
    %v110 = vadd.f32 %v90, %v108
    %111 = vset.pattern.permute.xlu0 3
    %112 = vperm.xlu0 %111, %v45
    %v113 = vpop.permute.xlu0 %112
    %114 = vset.pattern.permute.xlu0 3
    %115 = vperm.xlu0 %114, %v46
    %v116 = vpop.permute.xlu0 %115
    %vm117 = vcmp.eq.s32.totalorder %v113, %v50
    %vm118 = vcmp.eq.s32.totalorder %v116, %v50
    %119 = vset.pattern.permute.xlu0 3
    %120 = vperm.xlu0 %119, %v47
    %v121 = vpop.permute.xlu0 %120
    %123 = vset.pattern.permute.xlu0 3
    %124 = vperm.xlu0 %123, %v48
    %v125 = vpop.permute.xlu0 %124
    %v127 = vsel %vm117, %v121, 0.0
    %v128 = vsel %vm118, %v125, 0.0
    %v129 = vadd.f32 %v109, %v127
    %v130 = vadd.f32 %v110, %v128
    %131 = vset.pattern.permute.xlu0 4
    %132 = vperm.xlu0 %131, %v45
    %v133 = vpop.permute.xlu0 %132
    %134 = vset.pattern.permute.xlu0 4
    %135 = vperm.xlu0 %134, %v46
    %v136 = vpop.permute.xlu0 %135
    %vm137 = vcmp.eq.s32.totalorder %v133, %v50
    %vm138 = vcmp.eq.s32.totalorder %v136, %v50
    %139 = vset.pattern.permute.xlu0 4
    %140 = vperm.xlu0 %139, %v47
    %v141 = vpop.permute.xlu0 %140
    %143 = vset.pattern.permute.xlu0 4
    %144 = vperm.xlu0 %143, %v48
    %v145 = vpop.permute.xlu0 %144
    %v147 = vsel %vm137, %v141, 0.0
    %v148 = vsel %vm138, %v145, 0.0
    %v149 = vadd.f32 %v129, %v147
    %v150 = vadd.f32 %v130, %v148
    %151 = vset.pattern.permute.xlu0 5
    %152 = vperm.xlu0 %151, %v45
    %v153 = vpop.permute.xlu0 %152
    %154 = vset.pattern.permute.xlu0 5
    %155 = vperm.xlu0 %154, %v46
    %v156 = vpop.permute.xlu0 %155
    %vm157 = vcmp.eq.s32.totalorder %v153, %v50
    %vm158 = vcmp.eq.s32.totalorder %v156, %v50
    %159 = vset.pattern.permute.xlu0 5
    %160 = vperm.xlu0 %159, %v47
    %v161 = vpop.permute.xlu0 %160
    %163 = vset.pattern.permute.xlu0 5
    %164 = vperm.xlu0 %163, %v48
    %v165 = vpop.permute.xlu0 %164
    %v167 = vsel %vm157, %v161, 0.0
    %v168 = vsel %vm158, %v165, 0.0
    %v169 = vadd.f32 %v149, %v167
    %v170 = vadd.f32 %v150, %v168
    %171 = vset.pattern.permute.xlu0 6
    %172 = vperm.xlu0 %171, %v45
    %v173 = vpop.permute.xlu0 %172
    %174 = vset.pattern.permute.xlu0 6
    %175 = vperm.xlu0 %174, %v46
    %v176 = vpop.permute.xlu0 %175
    %vm177 = vcmp.eq.s32.totalorder %v173, %v50
    %vm178 = vcmp.eq.s32.totalorder %v176, %v50
    %179 = vset.pattern.permute.xlu0 6
    %180 = vperm.xlu0 %179, %v47
    %v181 = vpop.permute.xlu0 %180
    %183 = vset.pattern.permute.xlu0 6
    %184 = vperm.xlu0 %183, %v48
    %v185 = vpop.permute.xlu0 %184
    %v187 = vsel %vm177, %v181, 0.0
    %v188 = vsel %vm178, %v185, 0.0
    %v189 = vadd.f32 %v169, %v187
    %v190 = vadd.f32 %v170, %v188
    %191 = vset.pattern.permute.xlu0 7
    %192 = vperm.xlu0 %191, %v45
    %v193 = vpop.permute.xlu0 %192
    %194 = vset.pattern.permute.xlu0 7
    %195 = vperm.xlu0 %194, %v46
    %v196 = vpop.permute.xlu0 %195
    %vm197 = vcmp.eq.s32.totalorder %v193, %v50
    %vm198 = vcmp.eq.s32.totalorder %v196, %v50
    %199 = vset.pattern.permute.xlu0 7
    %200 = vperm.xlu0 %199, %v47
    %v201 = vpop.permute.xlu0 %200
    %203 = vset.pattern.permute.xlu0 7
    %204 = vperm.xlu0 %203, %v48
    %v205 = vpop.permute.xlu0 %204
    %v207 = vsel %vm197, %v201, 0.0
    %v208 = vsel %vm198, %v205, 0.0
    %v209 = vadd.f32 %v189, %v207
    %v210 = vadd.f32 %v190, %v208
    %v211 = vld [vmem:[%s3] sm:$0xff]
    %v212 = vld [vmem:[%s3 + $0x8] sm:$0xff]
    %v213 = vld [vmem:[%s3 + $0x10] sm:$0xff]
    %v214 = vld [vmem:[%s3 + $0x18] sm:$0xff]
    %v215 = vld [vmem:[%s3 + $0x20] sm:$0xff]
    %v216 = vld [vmem:[%s3 + $0x28] sm:$0xff]
    %v217 = vld [vmem:[%s3 + $0x30] sm:$0xff]
    %v218 = vld [vmem:[%s3 + $0x38] sm:$0xff]
    %v219 = vld [vmem:[%s3 + $0x40] sm:$0xff]
    %v220 = vld [vmem:[%s3 + $0x48] sm:$0xff]
    %v221 = vld [vmem:[%s3 + $0x50] sm:$0xff]
    %v222 = vld [vmem:[%s3 + $0x58] sm:$0xff]
    %v223 = vld [vmem:[%s3 + $0x60] sm:$0xff]
    %v224 = vld [vmem:[%s3 + $0x68] sm:$0xff]
    %v225 = vld [vmem:[%s3 + $0x70] sm:$0xff]
    %v226 = vld [vmem:[%s3 + $0x78] sm:$0xff]
    %227 = vmatprep.subr.mxu0 0.0
    %228 = vmatpush1.msra.mxu0 %v211
    %229 = vmatprep.subr.mxu0 0.0
    %230 = vmatpush1.msra.mxu0 %v212
    %231 = vmatprep.subr.mxu0 0.0
    %232 = vmatpush1.msra.mxu0 %v213
    %233 = vmatprep.subr.mxu0 0.0
    %234 = vmatpush1.msra.mxu0 %v214
    %235 = vmatprep.subr.mxu0 0.0
    %236 = vmatpush1.msra.mxu0 %v215
    %237 = vmatprep.subr.mxu0 0.0
    %238 = vmatpush1.msra.mxu0 %v216
    %239 = vmatprep.subr.mxu0 0.0
    %240 = vmatpush1.msra.mxu0 %v217
    %241 = vmatprep.subr.mxu0 0.0
    %242 = vmatpush1.msra.mxu0 %v218
    %243 = vmatprep.subr.mxu0 0.0
    %244 = vmatpush1.msra.mxu0 %v219
    %245 = vmatprep.subr.mxu0 0.0
    %246 = vmatpush1.msra.mxu0 %v220
    %247 = vmatprep.subr.mxu0 0.0
    %248 = vmatpush1.msra.mxu0 %v221
    %249 = vmatprep.subr.mxu0 0.0
    %250 = vmatpush1.msra.mxu0 %v222
    %251 = vmatprep.subr.mxu0 0.0
    %252 = vmatpush1.msra.mxu0 %v223
    %253 = vmatprep.subr.mxu0 0.0
    %254 = vmatpush1.msra.mxu0 %v224
    %255 = vmatprep.subr.mxu0 0.0
    %256 = vmatpush1.msra.mxu0 %v225
    %257 = vmatprep.subr.mxu0 0.0
    %258 = vmatpush1.msra.mxu0 %v226
    %259 = vmatprep.subr.mxu0 0.0
    %260 = vmatpush1.msra.mxu0 0.0
    %261 = vmatprep.subr.mxu0 0.0
    %262 = vmatpush1.msra.mxu0 0.0
    %263 = vmatprep.subr.mxu0 0.0
    %264 = vmatpush1.msra.mxu0 0.0
    %265 = vmatprep.subr.mxu0 0.0
    %266 = vmatpush1.msra.mxu0 0.0
    %267 = vmatprep.subr.mxu0 0.0
    %268 = vmatpush1.msra.mxu0 0.0
    %269 = vmatprep.subr.mxu0 0.0
    %270 = vmatpush1.msra.mxu0 0.0
    %271 = vmatprep.subr.mxu0 0.0
    %272 = vmatpush1.msra.mxu0 0.0
    %273 = vmatprep.subr.mxu0 0.0
    %274 = vmatpush1.msra.mxu0 0.0
    %275 = vmatprep.subr.mxu0 0.0
    %276 = vmatpush1.msra.mxu0 0.0
    %277 = vmatprep.subr.mxu0 0.0
    %278 = vmatpush1.msra.mxu0 0.0
    %279 = vmatprep.subr.mxu0 0.0
    %280 = vmatpush1.msra.mxu0 0.0
    %281 = vmatprep.subr.mxu0 0.0
    %282 = vmatpush1.msra.mxu0 0.0
    %283 = vmatprep.subr.mxu0 0.0
    %284 = vmatpush1.msra.mxu0 0.0
    %285 = vmatprep.subr.mxu0 0.0
    %286 = vmatpush1.msra.mxu0 0.0
    %287 = vmatprep.subr.mxu0 0.0
    %288 = vmatpush1.msra.mxu0 0.0
    %289 = vmatprep.subr.mxu0 0.0
    %290 = vmatpush1.msra.mxu0 0.0
    %291 = vmatprep.mubr.f32.mxu0 0.0
    %292 = vmatmul.mubr.f32.gmra.mrb[0].mxu0 %v209
    %v293 = vpop.f32.mrb[0].mxu0
    %v294 = vadd.f32 0.0, %v293
    %v295 = vpop.f32.mrb[0].mxu0
    %296 = vmatprep.mubr.f32.mxu0 0.0
    %297 = vmatmul.mubr.f32.gmra.mrb[0].mxu0 %v210
    %v298 = vpop.f32.mrb[0].mxu0
    %v299 = vadd.f32 0.0, %v298
    %v300 = vpop.f32.mrb[0].mxu0
    %301 = vdwg.mxu0
    %vm302 = vcmask 64512
    %v303 = vsel %vm302, %v47, 0.0
    %304 = vadd.xlane.f32.xlu0 %v303
    %v305 = vpop.xlane.xlu0 %304
    %v306 = vsel %vm302, %v48, 0.0
    %307 = vadd.xlane.f32.xlu0 %v306
    %v308 = vpop.xlane.xlu0 %307
    %v309 = vadd.f32 %v305, 1e-09
    %v310 = vadd.f32 %v308, 1e-09
    %v311 = vrcp.pop %v309
    %v312 = vmul.f32 %v294, %v311
    %v313 = vrcp.pop %v310
    %v314 = vmul.f32 %v299, %v313
    %v315 = vld [vmem:[%s4] sm:$0xff]
    %v316 = vld [vmem:[%s4 + $0x8] sm:$0xff]
    %v317 = vld [vmem:[%s4 + $0x10] sm:$0xff]
    %v318 = vld [vmem:[%s4 + $0x18] sm:$0xff]
    %v319 = vld [vmem:[%s5] sm:$0x1]
    %v321 = vlaneseq
    %v322 = vshrl.u32 %v321, 7
    %v323 = vsub.s32 0, %v322
    %v324 = vrot.slane %v319, %v323
    %vm326 = vcmask 261120
    %v328 = vsel %vm326, %v312, 0
    %v331 = vsel %vm326, %v314, 0
    %333 = vmatprep.subr.mxu0 0.0
    %334 = vmatpush1.msra.mxu0 %v315
    %335 = vmatprep.subr.mxu0 0.0
    %336 = vmatpush1.msra.mxu0 %v316
    %337 = vmatprep.subr.mxu0 0.0
    %338 = vmatpush1.msra.mxu0 %v317
    %339 = vmatprep.subr.mxu0 0.0
    %340 = vmatpush1.msra.mxu0 %v318
    %341 = vmatprep.subr.mxu0 0.0
    %342 = vmatpush1.msra.mxu0 0.0
    %343 = vmatprep.subr.mxu0 0.0
    %344 = vmatpush1.msra.mxu0 0.0
    %345 = vmatprep.subr.mxu0 0.0
    %346 = vmatpush1.msra.mxu0 0.0
    %347 = vmatprep.subr.mxu0 0.0
    %348 = vmatpush1.msra.mxu0 0.0
    %349 = vmatprep.subr.mxu0 0.0
    %350 = vmatpush1.msra.mxu0 0.0
    %351 = vmatprep.subr.mxu0 0.0
    %352 = vmatpush1.msra.mxu0 0.0
    %353 = vmatprep.subr.mxu0 0.0
    %354 = vmatpush1.msra.mxu0 0.0
    %355 = vmatprep.subr.mxu0 0.0
    %356 = vmatpush1.msra.mxu0 0.0
    %357 = vmatprep.subr.mxu0 0.0
    %358 = vmatpush1.msra.mxu0 0.0
    %359 = vmatprep.subr.mxu0 0.0
    %360 = vmatpush1.msra.mxu0 0.0
    %361 = vmatprep.subr.mxu0 0.0
    %362 = vmatpush1.msra.mxu0 0.0
    %363 = vmatprep.subr.mxu0 0.0
    %364 = vmatpush1.msra.mxu0 0.0
    %365 = vmatprep.subr.mxu0 0.0
    %366 = vmatpush1.msra.mxu0 0.0
    %367 = vmatprep.subr.mxu0 0.0
    %368 = vmatpush1.msra.mxu0 0.0
    %369 = vmatprep.subr.mxu0 0.0
    %370 = vmatpush1.msra.mxu0 0.0
    %371 = vmatprep.subr.mxu0 0.0
    %372 = vmatpush1.msra.mxu0 0.0
    %373 = vmatprep.subr.mxu0 0.0
    %374 = vmatpush1.msra.mxu0 0.0
    %375 = vmatprep.subr.mxu0 0.0
    %376 = vmatpush1.msra.mxu0 0.0
    %377 = vmatprep.subr.mxu0 0.0
    %378 = vmatpush1.msra.mxu0 0.0
    %379 = vmatprep.subr.mxu0 0.0
    %380 = vmatpush1.msra.mxu0 0.0
    %381 = vmatprep.subr.mxu0 0.0
    %382 = vmatpush1.msra.mxu0 0.0
    %383 = vmatprep.subr.mxu0 0.0
    %384 = vmatpush1.msra.mxu0 0.0
    %385 = vmatprep.subr.mxu0 0.0
    %386 = vmatpush1.msra.mxu0 0.0
    %387 = vmatprep.subr.mxu0 0.0
    %388 = vmatpush1.msra.mxu0 0.0
    %389 = vmatprep.subr.mxu0 0.0
    %390 = vmatpush1.msra.mxu0 0.0
    %391 = vmatprep.subr.mxu0 0.0
    %392 = vmatpush1.msra.mxu0 0.0
    %393 = vmatprep.subr.mxu0 0.0
    %394 = vmatpush1.msra.mxu0 0.0
    %395 = vmatprep.subr.mxu0 0.0
    %396 = vmatpush1.msra.mxu0 0.0
    %397 = vmatprep.mubr.f32.mxu0 0.0
    %398 = vmatmul.mubr.f32.gmra.mrb[0].mxu0 %v328
    %v399 = vpop.f32.mrb[0].mxu0
    %v400 = vadd.f32 %v324, %v399
    %v401 = vpop.f32.mrb[0].mxu0
    %402 = vmatprep.mubr.f32.mxu0 0.0
    %403 = vmatmul.mubr.f32.gmra.mrb[0].mxu0 %v331
    %v404 = vpop.f32.mrb[0].mxu0
    %v405 = vadd.f32 %v324, %v404
    %v406 = vpop.f32.mrb[0].mxu0
    %407 = vdwg.mxu0
    %v408 = vld [vmem:[%s2] sm:$0xff]
    %v409 = vld [vmem:[%s2 + $0x8] sm:$0xff]
    %v410 = vld [vmem:[%s6] sm:$0x7]
    %412 = vset.pattern.permute.xlu0 0
    %413 = vperm.xlu0 %412, %v408
    %v414 = vpop.permute.xlu0 %413
    %417 = vset.pattern.permute.xlu0 0
    %418 = vperm.xlu0 %417, %v409
    %v419 = vpop.permute.xlu0 %418
    %v421 = vlaneseq
    %v422 = vshrl.u32 %v421, 7
    %v423 = vsub.s32 0, %v422
    %v424 = vrot.slane %v410, %v423
    %v425 = vmul.f32 %v414, %v424
    %v426 = vmul.f32 %v419, %v424
    %427 = vset.pattern.permute.xlu0 1
    %428 = vperm.xlu0 %427, %v408
    %v429 = vpop.permute.xlu0 %428
    %431 = vset.pattern.permute.xlu0 1
    %432 = vperm.xlu0 %431, %v409
    %v433 = vpop.permute.xlu0 %432
    %v435 = vlaneseq
    %v436 = vshrl.u32 %v435, 7
    %v437 = vsub.s32 1, %v436
    %v438 = vrot.slane %v410, %v437
    %v439 = vmul.f32 %v429, %v438
    %v440 = vmul.f32 %v433, %v438
    %v441 = vadd.f32 %v425, %v439
    %v442 = vadd.f32 %v426, %v440
    %443 = vset.pattern.permute.xlu0 2
    %444 = vperm.xlu0 %443, %v408
    %v445 = vpop.permute.xlu0 %444
    %447 = vset.pattern.permute.xlu0 2
    %448 = vperm.xlu0 %447, %v409
    %v449 = vpop.permute.xlu0 %448
    %v451 = vlaneseq
    %v452 = vshrl.u32 %v451, 7
    %v453 = vsub.s32 2, %v452
    %v454 = vrot.slane %v410, %v453
    %v455 = vmul.f32 %v445, %v454
    %v456 = vmul.f32 %v449, %v454
    %v457 = vadd.f32 %v441, %v455
    %v458 = vadd.f32 %v442, %v456
    %v459 = vld [vmem:[%s7] sm:$0x1]
    %v461 = vlaneseq
    %v462 = vshrl.u32 %v461, 7
    %v463 = vsub.s32 0, %v462
    %v464 = vrot.slane %v459, %v463
    %v466 = vadd.f32 %v457, %v464
    %v467 = vadd.f32 %v458, %v464
    %v468 = vmax.f32 %v466, 0.0
    %v469 = vmax.f32 %v467, 0.0
    %v470 = vld [vmem:[%s8] sm:$0xff]
    %v471 = vld [vmem:[%s8 + $0x8] sm:$0xff]
    %v472 = vld [vmem:[%s9] sm:$0x1]
    %v474 = vlaneseq
    %v475 = vshrl.u32 %v474, 7
    %v476 = vsub.s32 0, %v475
    %v477 = vrot.slane %v472, %v476
    %vm479 = vcmask 130048
    %v481 = vsel %vm479, %v468, 0
    %v484 = vsel %vm479, %v469, 0
    %486 = vmatprep.subr.mxu0 0.0
    %487 = vmatpush1.msra.mxu0 %v470
    %488 = vmatprep.subr.mxu0 0.0
    %489 = vmatpush1.msra.mxu0 %v471
    %490 = vmatprep.subr.mxu0 0.0
    %491 = vmatpush1.msra.mxu0 0.0
    %492 = vmatprep.subr.mxu0 0.0
    %493 = vmatpush1.msra.mxu0 0.0
    %494 = vmatprep.subr.mxu0 0.0
    %495 = vmatpush1.msra.mxu0 0.0
    %496 = vmatprep.subr.mxu0 0.0
    %497 = vmatpush1.msra.mxu0 0.0
    %498 = vmatprep.subr.mxu0 0.0
    %499 = vmatpush1.msra.mxu0 0.0
    %500 = vmatprep.subr.mxu0 0.0
    %501 = vmatpush1.msra.mxu0 0.0
    %502 = vmatprep.subr.mxu0 0.0
    %503 = vmatpush1.msra.mxu0 0.0
    %504 = vmatprep.subr.mxu0 0.0
    %505 = vmatpush1.msra.mxu0 0.0
    %506 = vmatprep.subr.mxu0 0.0
    %507 = vmatpush1.msra.mxu0 0.0
    %508 = vmatprep.subr.mxu0 0.0
    %509 = vmatpush1.msra.mxu0 0.0
    %510 = vmatprep.subr.mxu0 0.0
    %511 = vmatpush1.msra.mxu0 0.0
    %512 = vmatprep.subr.mxu0 0.0
    %513 = vmatpush1.msra.mxu0 0.0
    %514 = vmatprep.subr.mxu0 0.0
    %515 = vmatpush1.msra.mxu0 0.0
    %516 = vmatprep.subr.mxu0 0.0
    %517 = vmatpush1.msra.mxu0 0.0
    %518 = vmatprep.subr.mxu0 0.0
    %519 = vmatpush1.msra.mxu0 0.0
    %520 = vmatprep.subr.mxu0 0.0
    %521 = vmatpush1.msra.mxu0 0.0
    %522 = vmatprep.subr.mxu0 0.0
    %523 = vmatpush1.msra.mxu0 0.0
    %524 = vmatprep.subr.mxu0 0.0
    %525 = vmatpush1.msra.mxu0 0.0
    %526 = vmatprep.subr.mxu0 0.0
    %527 = vmatpush1.msra.mxu0 0.0
    %528 = vmatprep.subr.mxu0 0.0
    %529 = vmatpush1.msra.mxu0 0.0
    %530 = vmatprep.subr.mxu0 0.0
    %531 = vmatpush1.msra.mxu0 0.0
    %532 = vmatprep.subr.mxu0 0.0
    %533 = vmatpush1.msra.mxu0 0.0
    %534 = vmatprep.subr.mxu0 0.0
    %535 = vmatpush1.msra.mxu0 0.0
    %536 = vmatprep.subr.mxu0 0.0
    %537 = vmatpush1.msra.mxu0 0.0
    %538 = vmatprep.subr.mxu0 0.0
    %539 = vmatpush1.msra.mxu0 0.0
    %540 = vmatprep.subr.mxu0 0.0
    %541 = vmatpush1.msra.mxu0 0.0
    %542 = vmatprep.subr.mxu0 0.0
    %543 = vmatpush1.msra.mxu0 0.0
    %544 = vmatprep.subr.mxu0 0.0
    %545 = vmatpush1.msra.mxu0 0.0
    %546 = vmatprep.subr.mxu0 0.0
    %547 = vmatpush1.msra.mxu0 0.0
    %548 = vmatprep.subr.mxu0 0.0
    %549 = vmatpush1.msra.mxu0 0.0
    %550 = vmatprep.mubr.f32.mxu0 0.0
    %551 = vmatmul.mubr.f32.gmra.mrb[0].mxu0 %v481
    %v552 = vpop.f32.mrb[0].mxu0
    %v553 = vadd.f32 %v477, %v552
    %v554 = vpop.f32.mrb[0].mxu0
    %555 = vmatprep.mubr.f32.mxu0 0.0
    %556 = vmatmul.mubr.f32.gmra.mrb[0].mxu0 %v484
    %v557 = vpop.f32.mrb[0].mxu0
    %v558 = vadd.f32 %v477, %v557
    %v559 = vpop.f32.mrb[0].mxu0
    %560 = vdwg.mxu0
    %v561 = vmax.f32 %v400, 0.0
    %v562 = vmax.f32 %v405, 0.0
    %v563 = vld [vmem:[%s10] sm:$0xff]
    %v564 = vld [vmem:[%s10 + $0x8] sm:$0xff]
    %v565 = vmax.f32 %v553, 0.0
    %v566 = vmax.f32 %v558, 0.0
    %v567 = vld [vmem:[%s11] sm:$0xff]
    %v568 = vld [vmem:[%s11 + $0x8] sm:$0xff]
    %v570 = vsel %vm479, %v565, 0
    %v573 = vsel %vm479, %v566, 0
    %575 = vmatprep.subr.mxu0 0.0
    %576 = vmatpush1.msra.mxu0 %v567
    %577 = vmatprep.subr.mxu0 0.0
    %578 = vmatpush1.msra.mxu0 %v568
    %579 = vmatprep.subr.mxu0 0.0
    %580 = vmatpush1.msra.mxu0 0.0
    %581 = vmatprep.subr.mxu0 0.0
    %582 = vmatpush1.msra.mxu0 0.0
    %583 = vmatprep.subr.mxu0 0.0
    %584 = vmatpush1.msra.mxu0 0.0
    %585 = vmatprep.subr.mxu0 0.0
    %586 = vmatpush1.msra.mxu0 0.0
    %587 = vmatprep.subr.mxu0 0.0
    %588 = vmatpush1.msra.mxu0 0.0
    %589 = vmatprep.subr.mxu0 0.0
    %590 = vmatpush1.msra.mxu0 0.0
    %591 = vmatprep.subr.mxu0 0.0
    %592 = vmatpush1.msra.mxu0 0.0
    %593 = vmatprep.subr.mxu0 0.0
    %594 = vmatpush1.msra.mxu0 0.0
    %595 = vmatprep.subr.mxu0 0.0
    %596 = vmatpush1.msra.mxu0 0.0
    %597 = vmatprep.subr.mxu0 0.0
    %598 = vmatpush1.msra.mxu0 0.0
    %599 = vmatprep.subr.mxu0 0.0
    %600 = vmatpush1.msra.mxu0 0.0
    %601 = vmatprep.subr.mxu0 0.0
    %602 = vmatpush1.msra.mxu0 0.0
    %603 = vmatprep.subr.mxu0 0.0
    %604 = vmatpush1.msra.mxu0 0.0
    %605 = vmatprep.subr.mxu0 0.0
    %606 = vmatpush1.msra.mxu0 0.0
    %607 = vmatprep.subr.mxu0 0.0
    %608 = vmatpush1.msra.mxu0 0.0
    %609 = vmatprep.subr.mxu0 0.0
    %610 = vmatpush1.msra.mxu0 0.0
    %611 = vmatprep.subr.mxu0 0.0
    %612 = vmatpush1.msra.mxu0 0.0
    %613 = vmatprep.subr.mxu0 0.0
    %614 = vmatpush1.msra.mxu0 0.0
    %615 = vmatprep.subr.mxu0 0.0
    %616 = vmatpush1.msra.mxu0 0.0
    %617 = vmatprep.subr.mxu0 0.0
    %618 = vmatpush1.msra.mxu0 0.0
    %619 = vmatprep.subr.mxu0 0.0
    %620 = vmatpush1.msra.mxu0 0.0
    %621 = vmatprep.subr.mxu0 0.0
    %622 = vmatpush1.msra.mxu0 0.0
    %623 = vmatprep.subr.mxu0 0.0
    %624 = vmatpush1.msra.mxu0 0.0
    %625 = vmatprep.subr.mxu0 0.0
    %626 = vmatpush1.msra.mxu0 0.0
    %627 = vmatprep.subr.mxu0 0.0
    %628 = vmatpush1.msra.mxu0 0.0
    %629 = vmatprep.subr.mxu0 0.0
    %630 = vmatpush1.msra.mxu0 0.0
    %631 = vmatprep.subr.mxu0 0.0
    %632 = vmatpush1.msra.mxu0 0.0
    %633 = vmatprep.subr.mxu0 0.0
    %634 = vmatpush1.msra.mxu0 0.0
    %635 = vmatprep.subr.mxu0 0.0
    %636 = vmatpush1.msra.mxu0 0.0
    %637 = vmatprep.subr.mxu0 0.0
    %638 = vmatpush1.msra.mxu0 0.0
    %639 = vmatprep.mubr.f32.mxu0 0.0
    %640 = vmatmul.mubr.f32.gmra.mrb[0].mxu0 %v570
    %v641 = vpop.f32.mrb[0].mxu0
    %v642 = vadd.f32 0.0, %v641
    %v643 = vpop.f32.mrb[0].mxu0
    %644 = vmatprep.mubr.f32.mxu0 0.0
    %645 = vmatmul.mubr.f32.gmra.mrb[0].mxu0 %v573
    %v646 = vpop.f32.mrb[0].mxu0
    %v647 = vadd.f32 0.0, %v646
    %v648 = vpop.f32.mrb[0].mxu0
    %649 = vdwg.mxu0
    %v651 = vsel %vm479, %v561, 0
    %v654 = vsel %vm479, %v562, 0
    %656 = vmatprep.subr.mxu0 0.0
    %657 = vmatpush1.msra.mxu0 %v563
    %658 = vmatprep.subr.mxu0 0.0
    %659 = vmatpush1.msra.mxu0 %v564
    %660 = vmatprep.subr.mxu0 0.0
    %661 = vmatpush1.msra.mxu0 0.0
    %662 = vmatprep.subr.mxu0 0.0
    %663 = vmatpush1.msra.mxu0 0.0
    %664 = vmatprep.subr.mxu0 0.0
    %665 = vmatpush1.msra.mxu0 0.0
    %666 = vmatprep.subr.mxu0 0.0
    %667 = vmatpush1.msra.mxu0 0.0
    %668 = vmatprep.subr.mxu0 0.0
    %669 = vmatpush1.msra.mxu0 0.0
    %670 = vmatprep.subr.mxu0 0.0
    %671 = vmatpush1.msra.mxu0 0.0
    %672 = vmatprep.subr.mxu0 0.0
    %673 = vmatpush1.msra.mxu0 0.0
    %674 = vmatprep.subr.mxu0 0.0
    %675 = vmatpush1.msra.mxu0 0.0
    %676 = vmatprep.subr.mxu0 0.0
    %677 = vmatpush1.msra.mxu0 0.0
    %678 = vmatprep.subr.mxu0 0.0
    %679 = vmatpush1.msra.mxu0 0.0
    %680 = vmatprep.subr.mxu0 0.0
    %681 = vmatpush1.msra.mxu0 0.0
    %682 = vmatprep.subr.mxu0 0.0
    %683 = vmatpush1.msra.mxu0 0.0
    %684 = vmatprep.subr.mxu0 0.0
    %685 = vmatpush1.msra.mxu0 0.0
    %686 = vmatprep.subr.mxu0 0.0
    %687 = vmatpush1.msra.mxu0 0.0
    %688 = vmatprep.subr.mxu0 0.0
    %689 = vmatpush1.msra.mxu0 0.0
    %690 = vmatprep.subr.mxu0 0.0
    %691 = vmatpush1.msra.mxu0 0.0
    %692 = vmatprep.subr.mxu0 0.0
    %693 = vmatpush1.msra.mxu0 0.0
    %694 = vmatprep.subr.mxu0 0.0
    %695 = vmatpush1.msra.mxu0 0.0
    %696 = vmatprep.subr.mxu0 0.0
    %697 = vmatpush1.msra.mxu0 0.0
    %698 = vmatprep.subr.mxu0 0.0
    %699 = vmatpush1.msra.mxu0 0.0
    %700 = vmatprep.subr.mxu0 0.0
    %701 = vmatpush1.msra.mxu0 0.0
    %702 = vmatprep.subr.mxu0 0.0
    %703 = vmatpush1.msra.mxu0 0.0
    %704 = vmatprep.subr.mxu0 0.0
    %705 = vmatpush1.msra.mxu0 0.0
    %706 = vmatprep.subr.mxu0 0.0
    %707 = vmatpush1.msra.mxu0 0.0
    %708 = vmatprep.subr.mxu0 0.0
    %709 = vmatpush1.msra.mxu0 0.0
    %710 = vmatprep.subr.mxu0 0.0
    %711 = vmatpush1.msra.mxu0 0.0
    %712 = vmatprep.subr.mxu0 0.0
    %713 = vmatpush1.msra.mxu0 0.0
    %714 = vmatprep.subr.mxu0 0.0
    %715 = vmatpush1.msra.mxu0 0.0
    %716 = vmatprep.subr.mxu0 0.0
    %717 = vmatpush1.msra.mxu0 0.0
    %718 = vmatprep.subr.mxu0 0.0
    %719 = vmatpush1.msra.mxu0 0.0
    %720 = vmatprep.mubr.f32.mxu0 0.0
    %721 = vmatmul.mubr.f32.gmra.mrb[0].mxu0 %v651
    %v722 = vpop.f32.mrb[0].mxu0
    %v723 = vadd.f32 %v642, %v722
    %v724 = vpop.f32.mrb[0].mxu0
    %725 = vmatprep.mubr.f32.mxu0 0.0
    %726 = vmatmul.mubr.f32.gmra.mrb[0].mxu0 %v654
    %v727 = vpop.f32.mrb[0].mxu0
    %v728 = vadd.f32 %v647, %v727
    %v729 = vpop.f32.mrb[0].mxu0
    %730 = vdwg.mxu0
    %v731 = vld [vmem:[%s12] sm:$0x1]
    %v733 = vlaneseq
    %v734 = vshrl.u32 %v733, 7
    %v735 = vsub.s32 0, %v734
    %v736 = vrot.slane %v731, %v735
    %v738 = vadd.f32 %v723, %v736
    %v739 = vadd.f32 %v728, %v736
    %740 = vst.msk [vmem:[#allocation2] sm:$0xff] %vm326, %v738
    %741 = vst.msk [vmem:[#allocation2 + $0x8] sm:$0xff] %vm326, %v739
    // Predicated region
    $region54: #{tpu_custom_call.1} parent=1 // pred_check
      _
    $region55: #{tpu_custom_call.1} parent=1 // pred_check_branch
      %743 = sbr.rel (0) target = $region57
    $region56: #{tpu_custom_call.1} parent=1 // pred_region
      %s745 = ssub.s32 256, 256
      %746 = vsyncadd [#allocation3], %s745
      %s747 = sshll.u32 [#allocation2], 4
      %s748 = int_to_ptr.vmem [resolvable:$true] %s747
      %753 = dma.vmem_to_hbm [thread:$0]  %s748, 256, %s13, [#allocation3], 128, 128, 8
    $region57: #{tpu_custom_call.1} parent=1 // pred_fallthru
      _
    // Predicated region
    $region58: #{tpu_custom_call.1} parent=1 // pred_check
      _
    $region59: #{tpu_custom_call.1} parent=1 // pred_check_branch
      %755 = sbr.rel (0) target = $region61
    $region60: #{tpu_custom_call.1} parent=1 // pred_region
      %756 = dma.done [#allocation3], 256
    $region61: #{tpu_custom_call.1} parent=1 // pred_fallthru
      _
    %757 = vsyncpa [#allocation3], 1

// kernel: tpu_custom_call.1
$region0: #{tpu_custom_call.1}
  #allocation0 [shape = 'u32[]', space=smem, size = 0x4, offset = 0x4, fixed_abs, tag = 'smem constant byte address 0x4 - core index']
  #allocation1 [shape = 'u32[144,128]{1,0:T(1,128)}', space=vmem, size = 0x12000, scoped, tag = 'internal scratch']
  %s0 = inlined_call_operand.vmem [shape: s32[16,8], index: 0, kind: input, shape index: {}]
  %s1 = inlined_call_operand.vmem [shape: f32[16,8], index: 1, kind: input, shape index: {}]
  %s2 = inlined_call_operand.vmem [shape: f32[16,3], index: 2, kind: input, shape index: {}]
  %s3 = inlined_call_operand.vmem [shape: f32[128,32], index: 3, kind: input, shape index: {}]
  %s4 = inlined_call_operand.vmem [shape: f32[32,16], index: 4, kind: input, shape index: {}]
  %s5 = inlined_call_operand.vmem [shape: f32[1,16], index: 5, kind: input, shape index: {}]
  %s6 = inlined_call_operand.vmem [shape: f32[3,16], index: 6, kind: input, shape index: {}]
  %s7 = inlined_call_operand.vmem [shape: f32[1,16], index: 7, kind: input, shape index: {}]
  %s8 = inlined_call_operand.vmem [shape: f32[16,16], index: 8, kind: input, shape index: {}]
  %s9 = inlined_call_operand.vmem [shape: f32[1,16], index: 9, kind: input, shape index: {}]
  %s10 = inlined_call_operand.vmem [shape: f32[16,32], index: 10, kind: input, shape index: {}]
  %s11 = inlined_call_operand.vmem [shape: f32[16,32], index: 11, kind: input, shape index: {}]
  %s12 = inlined_call_operand.vmem [shape: f32[1,32], index: 12, kind: input, shape index: {}]
  %s13 = inlined_call_operand.hbm [shape: f32[16,32], index: 13, kind: output, shape index: {}]
  %s14 = sld [smem:[#allocation0]]
  $region62: #{tpu_custom_call.1} parent=0
    _
  %s16 = ssub.s32 1, %s14
  %s17 = scalar_select 0, %s16, %s14
  $region1: #{tpu_custom_call.1} parent=0
    #allocation2 [shape = 'u8[8192]{0}', space=vmem, size = 0x2000, scoped, tag = 'output window, operand 0, single buffered']
    #allocation3 [shape = 's32[1]{0}', space=sflag, size = 0x4, scoped, tag = 'scoped memory for tpu_custom_call.1']
    %18 = vsyncpa [#allocation3], 0
    // Predicated region
    $region2: #{tpu_custom_call.1} parent=1 // pred_check
      _
    $region3: #{tpu_custom_call.1} parent=1 // pred_check_branch
      %20 = sbr.rel (0) target = $region5
    $region4: #{tpu_custom_call.1} parent=1 // pred_region
      _
    $region5: #{tpu_custom_call.1} parent=1 // pred_fallthru
      _
    // Predicated region
    $region6: #{tpu_custom_call.1} parent=1 // pred_check
      _
    $region7: #{tpu_custom_call.1} parent=1 // pred_check_branch
      %22 = sbr.rel (0) target = $region9
    $region8: #{tpu_custom_call.1} parent=1 // pred_region
      _
    $region9: #{tpu_custom_call.1} parent=1 // pred_fallthru
      _
    // Predicated region
    $region10: #{tpu_custom_call.1} parent=1 // pred_check
      _
    $region11: #{tpu_custom_call.1} parent=1 // pred_check_branch
      %24 = sbr.rel (0) target = $region13
    $region12: #{tpu_custom_call.1} parent=1 // pred_region
      _
    $region13: #{tpu_custom_call.1} parent=1 // pred_fallthru
      _
    // Predicated region
    $region14: #{tpu_custom_call.1} parent=1 // pred_check
      _
    $region15: #{tpu_custom_call.1} parent=1 // pred_check_branch
      %26 = sbr.rel (0) target = $region17
    $region16: #{tpu_custom_call.1} parent=1 // pred_region
      _
    $region17: #{tpu_custom_call.1} parent=1 // pred_fallthru
      _
    // Predicated region
    $region18: #{tpu_custom_call.1} parent=1 // pred_check
      _
    $region19: #{tpu_custom_call.1} parent=1 // pred_check_branch
      %28 = sbr.rel (0) target = $region21
    $region20: #{tpu_custom_call.1} parent=1 // pred_region
      _
    $region21: #{tpu_custom_call.1} parent=1 // pred_fallthru
      _
    // Predicated region
    $region22: #{tpu_custom_call.1} parent=1 // pred_check
      _
    $region23: #{tpu_custom_call.1} parent=1 // pred_check_branch
      %30 = sbr.rel (0) target = $region25
    $region24: #{tpu_custom_call.1} parent=1 // pred_region
      _
    $region25: #{tpu_custom_call.1} parent=1 // pred_fallthru
      _
    // Predicated region
    $region26: #{tpu_custom_call.1} parent=1 // pred_check
      _
    $region27: #{tpu_custom_call.1} parent=1 // pred_check_branch
      %32 = sbr.rel (0) target = $region29
    $region28: #{tpu_custom_call.1} parent=1 // pred_region
      _
    $region29: #{tpu_custom_call.1} parent=1 // pred_fallthru
      _
    // Predicated region
    $region30: #{tpu_custom_call.1} parent=1 // pred_check
      _
    $region31: #{tpu_custom_call.1} parent=1 // pred_check_branch
      %34 = sbr.rel (0) target = $region33
    $region32: #{tpu_custom_call.1} parent=1 // pred_region
      _
    $region33: #{tpu_custom_call.1} parent=1 // pred_fallthru
      _
    // Predicated region
    $region34: #{tpu_custom_call.1} parent=1 // pred_check
      _
    $region35: #{tpu_custom_call.1} parent=1 // pred_check_branch
      %36 = sbr.rel (0) target = $region37
    $region36: #{tpu_custom_call.1} parent=1 // pred_region
      _
    $region37: #{tpu_custom_call.1} parent=1 // pred_fallthru
      _
    // Predicated region
    $region38: #{tpu_custom_call.1} parent=1 // pred_check
      _
    $region39: #{tpu_custom_call.1} parent=1 // pred_check_branch
      %38 = sbr.rel (0) target = $region41
    $region40: #{tpu_custom_call.1} parent=1 // pred_region
      _
    $region41: #{tpu_custom_call.1} parent=1 // pred_fallthru
      _
    // Predicated region
    $region42: #{tpu_custom_call.1} parent=1 // pred_check
      _
    $region43: #{tpu_custom_call.1} parent=1 // pred_check_branch
      %40 = sbr.rel (0) target = $region45
    $region44: #{tpu_custom_call.1} parent=1 // pred_region
      _
    $region45: #{tpu_custom_call.1} parent=1 // pred_fallthru
      _
    // Predicated region
    $region46: #{tpu_custom_call.1} parent=1 // pred_check
      _
    $region47: #{tpu_custom_call.1} parent=1 // pred_check_branch
      %42 = sbr.rel (0) target = $region49
    $region48: #{tpu_custom_call.1} parent=1 // pred_region
      _
    $region49: #{tpu_custom_call.1} parent=1 // pred_fallthru
      _
    // Predicated region
    $region50: #{tpu_custom_call.1} parent=1 // pred_check
      _
    $region51: #{tpu_custom_call.1} parent=1 // pred_check_branch
      %44 = sbr.rel (0) target = $region53
    $region52: #{tpu_custom_call.1} parent=1 // pred_region
      _
    $region53: #{tpu_custom_call.1} parent=1 // pred_fallthru
      _
    %v45 = vld [vmem:[%s0] sm:$0xff]
    %v46 = vld [vmem:[%s0 + $0x8] sm:$0xff]
    %v47 = vld [vmem:[%s1] sm:$0xff]
    %v48 = vld [vmem:[%s1 + $0x8] sm:$0xff]
    %v49 = vlaneseq
    %v50 = vand.u32 %v49, 127
    %51 = vset.pattern.permute.xlu0 0
    %52 = vperm.xlu0 %51, %v45
    %v53 = vpop.permute.xlu0 %52
    %54 = vset.pattern.permute.xlu0 0
    %55 = vperm.xlu0 %54, %v46
    %v56 = vpop.permute.xlu0 %55
    %vm57 = vcmp.eq.s32.totalorder %v53, %v50
    %vm58 = vcmp.eq.s32.totalorder %v56, %v50
    %60 = vset.pattern.permute.xlu0 0
    %61 = vperm.xlu0 %60, %v47
    %v62 = vpop.permute.xlu0 %61
    %65 = vset.pattern.permute.xlu0 0
    %66 = vperm.xlu0 %65, %v48
    %v67 = vpop.permute.xlu0 %66
    %v69 = vsel %vm57, %v62, 0.0
    %v70 = vsel %vm58, %v67, 0.0
    %71 = vset.pattern.permute.xlu0 1
    %72 = vperm.xlu0 %71, %v45
    %v73 = vpop.permute.xlu0 %72
    %74 = vset.pattern.permute.xlu0 1
    %75 = vperm.xlu0 %74, %v46
    %v76 = vpop.permute.xlu0 %75
    %vm77 = vcmp.eq.s32.totalorder %v73, %v50
    %vm78 = vcmp.eq.s32.totalorder %v76, %v50
    %79 = vset.pattern.permute.xlu0 1
    %80 = vperm.xlu0 %79, %v47
    %v81 = vpop.permute.xlu0 %80
    %83 = vset.pattern.permute.xlu0 1
    %84 = vperm.xlu0 %83, %v48
    %v85 = vpop.permute.xlu0 %84
    %v87 = vsel %vm77, %v81, 0.0
    %v88 = vsel %vm78, %v85, 0.0
    %v89 = vadd.f32 %v69, %v87
    %v90 = vadd.f32 %v70, %v88
    %91 = vset.pattern.permute.xlu0 2
    %92 = vperm.xlu0 %91, %v45
    %v93 = vpop.permute.xlu0 %92
    %94 = vset.pattern.permute.xlu0 2
    %95 = vperm.xlu0 %94, %v46
    %v96 = vpop.permute.xlu0 %95
    %vm97 = vcmp.eq.s32.totalorder %v93, %v50
    %vm98 = vcmp.eq.s32.totalorder %v96, %v50
    %99 = vset.pattern.permute.xlu0 2
    %100 = vperm.xlu0 %99, %v47
    %v101 = vpop.permute.xlu0 %100
    %103 = vset.pattern.permute.xlu0 2
    %104 = vperm.xlu0 %103, %v48
    %v105 = vpop.permute.xlu0 %104
    %v107 = vsel %vm97, %v101, 0.0
    %v108 = vsel %vm98, %v105, 0.0
    %v109 = vadd.f32 %v89, %v107
    %v110 = vadd.f32 %v90, %v108
    %111 = vset.pattern.permute.xlu0 3
    %112 = vperm.xlu0 %111, %v45
    %v113 = vpop.permute.xlu0 %112
    %114 = vset.pattern.permute.xlu0 3
    %115 = vperm.xlu0 %114, %v46
    %v116 = vpop.permute.xlu0 %115
    %vm117 = vcmp.eq.s32.totalorder %v113, %v50
    %vm118 = vcmp.eq.s32.totalorder %v116, %v50
    %119 = vset.pattern.permute.xlu0 3
    %120 = vperm.xlu0 %119, %v47
    %v121 = vpop.permute.xlu0 %120
    %123 = vset.pattern.permute.xlu0 3
    %124 = vperm.xlu0 %123, %v48
    %v125 = vpop.permute.xlu0 %124
    %v127 = vsel %vm117, %v121, 0.0
    %v128 = vsel %vm118, %v125, 0.0
    %v129 = vadd.f32 %v109, %v127
    %v130 = vadd.f32 %v110, %v128
    %131 = vset.pattern.permute.xlu0 4
    %132 = vperm.xlu0 %131, %v45
    %v133 = vpop.permute.xlu0 %132
    %134 = vset.pattern.permute.xlu0 4
    %135 = vperm.xlu0 %134, %v46
    %v136 = vpop.permute.xlu0 %135
    %vm137 = vcmp.eq.s32.totalorder %v133, %v50
    %vm138 = vcmp.eq.s32.totalorder %v136, %v50
    %139 = vset.pattern.permute.xlu0 4
    %140 = vperm.xlu0 %139, %v47
    %v141 = vpop.permute.xlu0 %140
    %143 = vset.pattern.permute.xlu0 4
    %144 = vperm.xlu0 %143, %v48
    %v145 = vpop.permute.xlu0 %144
    %v147 = vsel %vm137, %v141, 0.0
    %v148 = vsel %vm138, %v145, 0.0
    %v149 = vadd.f32 %v129, %v147
    %v150 = vadd.f32 %v130, %v148
    %151 = vset.pattern.permute.xlu0 5
    %152 = vperm.xlu0 %151, %v45
    %v153 = vpop.permute.xlu0 %152
    %154 = vset.pattern.permute.xlu0 5
    %155 = vperm.xlu0 %154, %v46
    %v156 = vpop.permute.xlu0 %155
    %vm157 = vcmp.eq.s32.totalorder %v153, %v50
    %vm158 = vcmp.eq.s32.totalorder %v156, %v50
    %159 = vset.pattern.permute.xlu0 5
    %160 = vperm.xlu0 %159, %v47
    %v161 = vpop.permute.xlu0 %160
    %163 = vset.pattern.permute.xlu0 5
    %164 = vperm.xlu0 %163, %v48
    %v165 = vpop.permute.xlu0 %164
    %v167 = vsel %vm157, %v161, 0.0
    %v168 = vsel %vm158, %v165, 0.0
    %v169 = vadd.f32 %v149, %v167
    %v170 = vadd.f32 %v150, %v168
    %171 = vset.pattern.permute.xlu0 6
    %172 = vperm.xlu0 %171, %v45
    %v173 = vpop.permute.xlu0 %172
    %174 = vset.pattern.permute.xlu0 6
    %175 = vperm.xlu0 %174, %v46
    %v176 = vpop.permute.xlu0 %175
    %vm177 = vcmp.eq.s32.totalorder %v173, %v50
    %vm178 = vcmp.eq.s32.totalorder %v176, %v50
    %179 = vset.pattern.permute.xlu0 6
    %180 = vperm.xlu0 %179, %v47
    %v181 = vpop.permute.xlu0 %180
    %183 = vset.pattern.permute.xlu0 6
    %184 = vperm.xlu0 %183, %v48
    %v185 = vpop.permute.xlu0 %184
    %v187 = vsel %vm177, %v181, 0.0
    %v188 = vsel %vm178, %v185, 0.0
    %v189 = vadd.f32 %v169, %v187
    %v190 = vadd.f32 %v170, %v188
    %191 = vset.pattern.permute.xlu0 7
    %192 = vperm.xlu0 %191, %v45
    %v193 = vpop.permute.xlu0 %192
    %194 = vset.pattern.permute.xlu0 7
    %195 = vperm.xlu0 %194, %v46
    %v196 = vpop.permute.xlu0 %195
    %vm197 = vcmp.eq.s32.totalorder %v193, %v50
    %vm198 = vcmp.eq.s32.totalorder %v196, %v50
    %199 = vset.pattern.permute.xlu0 7
    %200 = vperm.xlu0 %199, %v47
    %v201 = vpop.permute.xlu0 %200
    %203 = vset.pattern.permute.xlu0 7
    %204 = vperm.xlu0 %203, %v48
    %v205 = vpop.permute.xlu0 %204
    %v207 = vsel %vm197, %v201, 0.0
    %v208 = vsel %vm198, %v205, 0.0
    %v209 = vadd.f32 %v189, %v207
    %v210 = vadd.f32 %v190, %v208
    %v211 = vld [vmem:[%s3] sm:$0xff]
    %v212 = vld [vmem:[%s3 + $0x8] sm:$0xff]
    %v213 = vld [vmem:[%s3 + $0x10] sm:$0xff]
    %v214 = vld [vmem:[%s3 + $0x18] sm:$0xff]
    %v215 = vld [vmem:[%s3 + $0x20] sm:$0xff]
    %v216 = vld [vmem:[%s3 + $0x28] sm:$0xff]
    %v217 = vld [vmem:[%s3 + $0x30] sm:$0xff]
    %v218 = vld [vmem:[%s3 + $0x38] sm:$0xff]
    %v219 = vld [vmem:[%s3 + $0x40] sm:$0xff]
    %v220 = vld [vmem:[%s3 + $0x48] sm:$0xff]
    %v221 = vld [vmem:[%s3 + $0x50] sm:$0xff]
    %v222 = vld [vmem:[%s3 + $0x58] sm:$0xff]
    %v223 = vld [vmem:[%s3 + $0x60] sm:$0xff]
    %v224 = vld [vmem:[%s3 + $0x68] sm:$0xff]
    %v225 = vld [vmem:[%s3 + $0x70] sm:$0xff]
    %v226 = vld [vmem:[%s3 + $0x78] sm:$0xff]
    %227 = vmatprep.subr.mxu0 0.0
    %228 = vmatpush1.msra.mxu0 %v211
    %229 = vmatprep.subr.mxu0 0.0
    %230 = vmatpush1.msra.mxu0 %v212
    %231 = vmatprep.subr.mxu0 0.0
    %232 = vmatpush1.msra.mxu0 %v213
    %233 = vmatprep.subr.mxu0 0.0
    %234 = vmatpush1.msra.mxu0 %v214
    %235 = vmatprep.subr.mxu0 0.0
    %236 = vmatpush1.msra.mxu0 %v215
    %237 = vmatprep.subr.mxu0 0.0
    %238 = vmatpush1.msra.mxu0 %v216
    %239 = vmatprep.subr.mxu0 0.0
    %240 = vmatpush1.msra.mxu0 %v217
    %241 = vmatprep.subr.mxu0 0.0
    %242 = vmatpush1.msra.mxu0 %v218
    %243 = vmatprep.subr.mxu0 0.0
    %244 = vmatpush1.msra.mxu0 %v219
    %245 = vmatprep.subr.mxu0 0.0
    %246 = vmatpush1.msra.mxu0 %v220
    %247 = vmatprep.subr.mxu0 0.0
    %248 = vmatpush1.msra.mxu0 %v221
    %249 = vmatprep.subr.mxu0 0.0
    %250 = vmatpush1.msra.mxu0 %v222
    %251 = vmatprep.subr.mxu0 0.0
    %252 = vmatpush1.msra.mxu0 %v223
    %253 = vmatprep.subr.mxu0 0.0
    %254 = vmatpush1.msra.mxu0 %v224
    %255 = vmatprep.subr.mxu0 0.0
    %256 = vmatpush1.msra.mxu0 %v225
    %257 = vmatprep.subr.mxu0 0.0
    %258 = vmatpush1.msra.mxu0 %v226
    %259 = vmatprep.subr.mxu0 0.0
    %260 = vmatpush1.msra.mxu0 0.0
    %261 = vmatprep.subr.mxu0 0.0
    %262 = vmatpush1.msra.mxu0 0.0
    %263 = vmatprep.subr.mxu0 0.0
    %264 = vmatpush1.msra.mxu0 0.0
    %265 = vmatprep.subr.mxu0 0.0
    %266 = vmatpush1.msra.mxu0 0.0
    %267 = vmatprep.subr.mxu0 0.0
    %268 = vmatpush1.msra.mxu0 0.0
    %269 = vmatprep.subr.mxu0 0.0
    %270 = vmatpush1.msra.mxu0 0.0
    %271 = vmatprep.subr.mxu0 0.0
    %272 = vmatpush1.msra.mxu0 0.0
    %273 = vmatprep.subr.mxu0 0.0
    %274 = vmatpush1.msra.mxu0 0.0
    %275 = vmatprep.subr.mxu0 0.0
    %276 = vmatpush1.msra.mxu0 0.0
    %277 = vmatprep.subr.mxu0 0.0
    %278 = vmatpush1.msra.mxu0 0.0
    %279 = vmatprep.subr.mxu0 0.0
    %280 = vmatpush1.msra.mxu0 0.0
    %281 = vmatprep.subr.mxu0 0.0
    %282 = vmatpush1.msra.mxu0 0.0
    %283 = vmatprep.subr.mxu0 0.0
    %284 = vmatpush1.msra.mxu0 0.0
    %285 = vmatprep.subr.mxu0 0.0
    %286 = vmatpush1.msra.mxu0 0.0
    %287 = vmatprep.subr.mxu0 0.0
    %288 = vmatpush1.msra.mxu0 0.0
    %289 = vmatprep.subr.mxu0 0.0
    %290 = vmatpush1.msra.mxu0 0.0
    %291 = vmatprep.mubr.f32.mxu0 0.0
    %292 = vmatmul.mubr.f32.gmra.mrb[0].mxu0 %v209
    %v293 = vpop.f32.mrb[0].mxu0
    %v294 = vadd.f32 0.0, %v293
    %v295 = vpop.f32.mrb[0].mxu0
    %296 = vmatprep.mubr.f32.mxu0 0.0
    %297 = vmatmul.mubr.f32.gmra.mrb[0].mxu0 %v210
    %v298 = vpop.f32.mrb[0].mxu0
    %v299 = vadd.f32 0.0, %v298
    %v300 = vpop.f32.mrb[0].mxu0
    %301 = vdwg.mxu0
    %vm302 = vcmask 64512
    %v303 = vsel %vm302, %v47, 0.0
    %304 = vadd.xlane.f32.xlu0 %v303
    %v305 = vpop.xlane.xlu0 %304
    %v306 = vsel %vm302, %v48, 0.0
    %307 = vadd.xlane.f32.xlu0 %v306
    %v308 = vpop.xlane.xlu0 %307
    %v309 = vadd.f32 %v305, 1e-09
    %v310 = vadd.f32 %v308, 1e-09
    %v311 = vrcp.pop %v309
    %v312 = vmul.f32 %v294, %v311
    %v313 = vrcp.pop %v310
    %v314 = vmul.f32 %v299, %v313
    %v315 = vld [vmem:[%s4] sm:$0xff]
    %v316 = vld [vmem:[%s4 + $0x8] sm:$0xff]
    %v317 = vld [vmem:[%s4 + $0x10] sm:$0xff]
    %v318 = vld [vmem:[%s4 + $0x18] sm:$0xff]
    %v319 = vld [vmem:[%s5] sm:$0x1]
    %v321 = vlaneseq
    %v322 = vshrl.u32 %v321, 7
    %v323 = vsub.s32 0, %v322
    %v324 = vrot.slane %v319, %v323
    %vm326 = vcmask 261120
    %v328 = vsel %vm326, %v312, 0
    %v331 = vsel %vm326, %v314, 0
    %333 = vmatprep.subr.mxu0 0.0
    %334 = vmatpush1.msra.mxu0 %v315
    %335 = vmatprep.subr.mxu0 0.0
    %336 = vmatpush1.msra.mxu0 %v316
    %337 = vmatprep.subr.mxu0 0.0
    %338 = vmatpush1.msra.mxu0 %v317
    %339 = vmatprep.subr.mxu0 0.0
    %340 = vmatpush1.msra.mxu0 %v318
    %341 = vmatprep.subr.mxu0 0.0
    %342 = vmatpush1.msra.mxu0 0.0
    %343 = vmatprep.subr.mxu0 0.0
    %344 = vmatpush1.msra.mxu0 0.0
    %345 = vmatprep.subr.mxu0 0.0
    %346 = vmatpush1.msra.mxu0 0.0
    %347 = vmatprep.subr.mxu0 0.0
    %348 = vmatpush1.msra.mxu0 0.0
    %349 = vmatprep.subr.mxu0 0.0
    %350 = vmatpush1.msra.mxu0 0.0
    %351 = vmatprep.subr.mxu0 0.0
    %352 = vmatpush1.msra.mxu0 0.0
    %353 = vmatprep.subr.mxu0 0.0
    %354 = vmatpush1.msra.mxu0 0.0
    %355 = vmatprep.subr.mxu0 0.0
    %356 = vmatpush1.msra.mxu0 0.0
    %357 = vmatprep.subr.mxu0 0.0
    %358 = vmatpush1.msra.mxu0 0.0
    %359 = vmatprep.subr.mxu0 0.0
    %360 = vmatpush1.msra.mxu0 0.0
    %361 = vmatprep.subr.mxu0 0.0
    %362 = vmatpush1.msra.mxu0 0.0
    %363 = vmatprep.subr.mxu0 0.0
    %364 = vmatpush1.msra.mxu0 0.0
    %365 = vmatprep.subr.mxu0 0.0
    %366 = vmatpush1.msra.mxu0 0.0
    %367 = vmatprep.subr.mxu0 0.0
    %368 = vmatpush1.msra.mxu0 0.0
    %369 = vmatprep.subr.mxu0 0.0
    %370 = vmatpush1.msra.mxu0 0.0
    %371 = vmatprep.subr.mxu0 0.0
    %372 = vmatpush1.msra.mxu0 0.0
    %373 = vmatprep.subr.mxu0 0.0
    %374 = vmatpush1.msra.mxu0 0.0
    %375 = vmatprep.subr.mxu0 0.0
    %376 = vmatpush1.msra.mxu0 0.0
    %377 = vmatprep.subr.mxu0 0.0
    %378 = vmatpush1.msra.mxu0 0.0
    %379 = vmatprep.subr.mxu0 0.0
    %380 = vmatpush1.msra.mxu0 0.0
    %381 = vmatprep.subr.mxu0 0.0
    %382 = vmatpush1.msra.mxu0 0.0
    %383 = vmatprep.subr.mxu0 0.0
    %384 = vmatpush1.msra.mxu0 0.0
    %385 = vmatprep.subr.mxu0 0.0
    %386 = vmatpush1.msra.mxu0 0.0
    %387 = vmatprep.subr.mxu0 0.0
    %388 = vmatpush1.msra.mxu0 0.0
    %389 = vmatprep.subr.mxu0 0.0
    %390 = vmatpush1.msra.mxu0 0.0
    %391 = vmatprep.subr.mxu0 0.0
    %392 = vmatpush1.msra.mxu0 0.0
    %393 = vmatprep.subr.mxu0 0.0
    %394 = vmatpush1.msra.mxu0 0.0
    %395 = vmatprep.subr.mxu0 0.0
    %396 = vmatpush1.msra.mxu0 0.0
    %397 = vmatprep.mubr.f32.mxu0 0.0
    %398 = vmatmul.mubr.f32.gmra.mrb[0].mxu0 %v328
    %v399 = vpop.f32.mrb[0].mxu0
    %v400 = vadd.f32 %v324, %v399
    %v401 = vpop.f32.mrb[0].mxu0
    %402 = vmatprep.mubr.f32.mxu0 0.0
    %403 = vmatmul.mubr.f32.gmra.mrb[0].mxu0 %v331
    %v404 = vpop.f32.mrb[0].mxu0
    %v405 = vadd.f32 %v324, %v404
    %v406 = vpop.f32.mrb[0].mxu0
    %407 = vdwg.mxu0
    %v408 = vld [vmem:[%s2] sm:$0xff]
    %v409 = vld [vmem:[%s2 + $0x8] sm:$0xff]
    %v410 = vld [vmem:[%s6] sm:$0x7]
    %412 = vset.pattern.permute.xlu0 0
    %413 = vperm.xlu0 %412, %v408
    %v414 = vpop.permute.xlu0 %413
    %417 = vset.pattern.permute.xlu0 0
    %418 = vperm.xlu0 %417, %v409
    %v419 = vpop.permute.xlu0 %418
    %v421 = vlaneseq
    %v422 = vshrl.u32 %v421, 7
    %v423 = vsub.s32 0, %v422
    %v424 = vrot.slane %v410, %v423
    %v425 = vmul.f32 %v414, %v424
    %v426 = vmul.f32 %v419, %v424
    %427 = vset.pattern.permute.xlu0 1
    %428 = vperm.xlu0 %427, %v408
    %v429 = vpop.permute.xlu0 %428
    %431 = vset.pattern.permute.xlu0 1
    %432 = vperm.xlu0 %431, %v409
    %v433 = vpop.permute.xlu0 %432
    %v435 = vlaneseq
    %v436 = vshrl.u32 %v435, 7
    %v437 = vsub.s32 1, %v436
    %v438 = vrot.slane %v410, %v437
    %v439 = vmul.f32 %v429, %v438
    %v440 = vmul.f32 %v433, %v438
    %v441 = vadd.f32 %v425, %v439
    %v442 = vadd.f32 %v426, %v440
    %443 = vset.pattern.permute.xlu0 2
    %444 = vperm.xlu0 %443, %v408
    %v445 = vpop.permute.xlu0 %444
    %447 = vset.pattern.permute.xlu0 2
    %448 = vperm.xlu0 %447, %v409
    %v449 = vpop.permute.xlu0 %448
    %v451 = vlaneseq
    %v452 = vshrl.u32 %v451, 7
    %v453 = vsub.s32 2, %v452
    %v454 = vrot.slane %v410, %v453
    %v455 = vmul.f32 %v445, %v454
    %v456 = vmul.f32 %v449, %v454
    %v457 = vadd.f32 %v441, %v455
    %v458 = vadd.f32 %v442, %v456
    %v459 = vld [vmem:[%s7] sm:$0x1]
    %v461 = vlaneseq
    %v462 = vshrl.u32 %v461, 7
    %v463 = vsub.s32 0, %v462
    %v464 = vrot.slane %v459, %v463
    %v466 = vadd.f32 %v457, %v464
    %v467 = vadd.f32 %v458, %v464
    %v468 = vmax.f32 %v466, 0.0
    %v469 = vmax.f32 %v467, 0.0
    %v470 = vld [vmem:[%s8] sm:$0xff]
    %v471 = vld [vmem:[%s8 + $0x8] sm:$0xff]
    %v472 = vld [vmem:[%s9] sm:$0x1]
    %v474 = vlaneseq
    %v475 = vshrl.u32 %v474, 7
    %v476 = vsub.s32 0, %v475
    %v477 = vrot.slane %v472, %v476
    %vm479 = vcmask 130048
    %v481 = vsel %vm479, %v468, 0
    %v484 = vsel %vm479, %v469, 0
    %486 = vmatprep.subr.mxu0 0.0
    %487 = vmatpush1.msra.mxu0 %v470
    %488 = vmatprep.subr.mxu0 0.0
    %489 = vmatpush1.msra.mxu0 %v471
    %490 = vmatprep.subr.mxu0 0.0
    %491 = vmatpush1.msra.mxu0 0.0
    %492 = vmatprep.subr.mxu0 0.0
    %493 = vmatpush1.msra.mxu0 0.0
    %494 = vmatprep.subr.mxu0 0.0
    %495 = vmatpush1.msra.mxu0 0.0
    %496 = vmatprep.subr.mxu0 0.0
    %497 = vmatpush1.msra.mxu0 0.0
    %498 = vmatprep.subr.mxu0 0.0
    %499 = vmatpush1.msra.mxu0 0.0
    %500 = vmatprep.subr.mxu0 0.0
    %501 = vmatpush1.msra.mxu0 0.0
    %502 = vmatprep.subr.mxu0 0.0
    %503 = vmatpush1.msra.mxu0 0.0
    %504 = vmatprep.subr.mxu0 0.0
    %505 = vmatpush1.msra.mxu0 0.0
    %506 = vmatprep.subr.mxu0 0.0
    %507 = vmatpush1.msra.mxu0 0.0
    %508 = vmatprep.subr.mxu0 0.0
    %509 = vmatpush1.msra.mxu0 0.0
    %510 = vmatprep.subr.mxu0 0.0
    %511 = vmatpush1.msra.mxu0 0.0
    %512 = vmatprep.subr.mxu0 0.0
    %513 = vmatpush1.msra.mxu0 0.0
    %514 = vmatprep.subr.mxu0 0.0
    %515 = vmatpush1.msra.mxu0 0.0
    %516 = vmatprep.subr.mxu0 0.0
    %517 = vmatpush1.msra.mxu0 0.0
    %518 = vmatprep.subr.mxu0 0.0
    %519 = vmatpush1.msra.mxu0 0.0
    %520 = vmatprep.subr.mxu0 0.0
    %521 = vmatpush1.msra.mxu0 0.0
    %522 = vmatprep.subr.mxu0 0.0
    %523 = vmatpush1.msra.mxu0 0.0
    %524 = vmatprep.subr.mxu0 0.0
    %525 = vmatpush1.msra.mxu0 0.0
    %526 = vmatprep.subr.mxu0 0.0
    %527 = vmatpush1.msra.mxu0 0.0
    %528 = vmatprep.subr.mxu0 0.0
    %529 = vmatpush1.msra.mxu0 0.0
    %530 = vmatprep.subr.mxu0 0.0
    %531 = vmatpush1.msra.mxu0 0.0
    %532 = vmatprep.subr.mxu0 0.0
    %533 = vmatpush1.msra.mxu0 0.0
    %534 = vmatprep.subr.mxu0 0.0
    %535 = vmatpush1.msra.mxu0 0.0
    %536 = vmatprep.subr.mxu0 0.0
    %537 = vmatpush1.msra.mxu0 0.0
    %538 = vmatprep.subr.mxu0 0.0
    %539 = vmatpush1.msra.mxu0 0.0
    %540 = vmatprep.subr.mxu0 0.0
    %541 = vmatpush1.msra.mxu0 0.0
    %542 = vmatprep.subr.mxu0 0.0
    %543 = vmatpush1.msra.mxu0 0.0
    %544 = vmatprep.subr.mxu0 0.0
    %545 = vmatpush1.msra.mxu0 0.0
    %546 = vmatprep.subr.mxu0 0.0
    %547 = vmatpush1.msra.mxu0 0.0
    %548 = vmatprep.subr.mxu0 0.0
    %549 = vmatpush1.msra.mxu0 0.0
    %550 = vmatprep.mubr.f32.mxu0 0.0
    %551 = vmatmul.mubr.f32.gmra.mrb[0].mxu0 %v481
    %v552 = vpop.f32.mrb[0].mxu0
    %v553 = vadd.f32 %v477, %v552
    %v554 = vpop.f32.mrb[0].mxu0
    %555 = vmatprep.mubr.f32.mxu0 0.0
    %556 = vmatmul.mubr.f32.gmra.mrb[0].mxu0 %v484
    %v557 = vpop.f32.mrb[0].mxu0
    %v558 = vadd.f32 %v477, %v557
    %v559 = vpop.f32.mrb[0].mxu0
    %560 = vdwg.mxu0
    %v561 = vmax.f32 %v400, 0.0
    %v562 = vmax.f32 %v405, 0.0
    %v563 = vld [vmem:[%s10] sm:$0xff]
    %v564 = vld [vmem:[%s10 + $0x8] sm:$0xff]
    %v565 = vmax.f32 %v553, 0.0
    %v566 = vmax.f32 %v558, 0.0
    %v567 = vld [vmem:[%s11] sm:$0xff]
    %v568 = vld [vmem:[%s11 + $0x8] sm:$0xff]
    %v570 = vsel %vm479, %v565, 0
    %v573 = vsel %vm479, %v566, 0
    %575 = vmatprep.subr.mxu0 0.0
    %576 = vmatpush1.msra.mxu0 %v567
    %577 = vmatprep.subr.mxu0 0.0
    %578 = vmatpush1.msra.mxu0 %v568
    %579 = vmatprep.subr.mxu0 0.0
    %580 = vmatpush1.msra.mxu0 0.0
    %581 = vmatprep.subr.mxu0 0.0
    %582 = vmatpush1.msra.mxu0 0.0
    %583 = vmatprep.subr.mxu0 0.0
    %584 = vmatpush1.msra.mxu0 0.0
    %585 = vmatprep.subr.mxu0 0.0
    %586 = vmatpush1.msra.mxu0 0.0
    %587 = vmatprep.subr.mxu0 0.0
    %588 = vmatpush1.msra.mxu0 0.0
    %589 = vmatprep.subr.mxu0 0.0
    %590 = vmatpush1.msra.mxu0 0.0
    %591 = vmatprep.subr.mxu0 0.0
    %592 = vmatpush1.msra.mxu0 0.0
    %593 = vmatprep.subr.mxu0 0.0
    %594 = vmatpush1.msra.mxu0 0.0
    %595 = vmatprep.subr.mxu0 0.0
    %596 = vmatpush1.msra.mxu0 0.0
    %597 = vmatprep.subr.mxu0 0.0
    %598 = vmatpush1.msra.mxu0 0.0
    %599 = vmatprep.subr.mxu0 0.0
    %600 = vmatpush1.msra.mxu0 0.0
    %601 = vmatprep.subr.mxu0 0.0
    %602 = vmatpush1.msra.mxu0 0.0
    %603 = vmatprep.subr.mxu0 0.0
    %604 = vmatpush1.msra.mxu0 0.0
    %605 = vmatprep.subr.mxu0 0.0
    %606 = vmatpush1.msra.mxu0 0.0
    %607 = vmatprep.subr.mxu0 0.0
    %608 = vmatpush1.msra.mxu0 0.0
    %609 = vmatprep.subr.mxu0 0.0
    %610 = vmatpush1.msra.mxu0 0.0
    %611 = vmatprep.subr.mxu0 0.0
    %612 = vmatpush1.msra.mxu0 0.0
    %613 = vmatprep.subr.mxu0 0.0
    %614 = vmatpush1.msra.mxu0 0.0
    %615 = vmatprep.subr.mxu0 0.0
    %616 = vmatpush1.msra.mxu0 0.0
    %617 = vmatprep.subr.mxu0 0.0
    %618 = vmatpush1.msra.mxu0 0.0
    %619 = vmatprep.subr.mxu0 0.0
    %620 = vmatpush1.msra.mxu0 0.0
    %621 = vmatprep.subr.mxu0 0.0
    %622 = vmatpush1.msra.mxu0 0.0
    %623 = vmatprep.subr.mxu0 0.0
    %624 = vmatpush1.msra.mxu0 0.0
    %625 = vmatprep.subr.mxu0 0.0
    %626 = vmatpush1.msra.mxu0 0.0
    %627 = vmatprep.subr.mxu0 0.0
    %628 = vmatpush1.msra.mxu0 0.0
    %629 = vmatprep.subr.mxu0 0.0
    %630 = vmatpush1.msra.mxu0 0.0
    %631 = vmatprep.subr.mxu0 0.0
    %632 = vmatpush1.msra.mxu0 0.0
    %633 = vmatprep.subr.mxu0 0.0
    %634 = vmatpush1.msra.mxu0 0.0
    %635 = vmatprep.subr.mxu0 0.0
    %636 = vmatpush1.msra.mxu0 0.0
    %637 = vmatprep.subr.mxu0 0.0
    %638 = vmatpush1.msra.mxu0 0.0
    %639 = vmatprep.mubr.f32.mxu0 0.0
    %640 = vmatmul.mubr.f32.gmra.mrb[0].mxu0 %v570
    %v641 = vpop.f32.mrb[0].mxu0
    %v642 = vadd.f32 0.0, %v641
    %v643 = vpop.f32.mrb[0].mxu0
    %644 = vmatprep.mubr.f32.mxu0 0.0
    %645 = vmatmul.mubr.f32.gmra.mrb[0].mxu0 %v573
    %v646 = vpop.f32.mrb[0].mxu0
    %v647 = vadd.f32 0.0, %v646
    %v648 = vpop.f32.mrb[0].mxu0
    %649 = vdwg.mxu0
    %v651 = vsel %vm479, %v561, 0
    %v654 = vsel %vm479, %v562, 0
    %656 = vmatprep.subr.mxu0 0.0
    %657 = vmatpush1.msra.mxu0 %v563
    %658 = vmatprep.subr.mxu0 0.0
    %659 = vmatpush1.msra.mxu0 %v564
    %660 = vmatprep.subr.mxu0 0.0
    %661 = vmatpush1.msra.mxu0 0.0
    %662 = vmatprep.subr.mxu0 0.0
    %663 = vmatpush1.msra.mxu0 0.0
    %664 = vmatprep.subr.mxu0 0.0
    %665 = vmatpush1.msra.mxu0 0.0
    %666 = vmatprep.subr.mxu0 0.0
    %667 = vmatpush1.msra.mxu0 0.0
    %668 = vmatprep.subr.mxu0 0.0
    %669 = vmatpush1.msra.mxu0 0.0
    %670 = vmatprep.subr.mxu0 0.0
    %671 = vmatpush1.msra.mxu0 0.0
    %672 = vmatprep.subr.mxu0 0.0
    %673 = vmatpush1.msra.mxu0 0.0
    %674 = vmatprep.subr.mxu0 0.0
    %675 = vmatpush1.msra.mxu0 0.0
    %676 = vmatprep.subr.mxu0 0.0
    %677 = vmatpush1.msra.mxu0 0.0
    %678 = vmatprep.subr.mxu0 0.0
    %679 = vmatpush1.msra.mxu0 0.0
    %680 = vmatprep.subr.mxu0 0.0
    %681 = vmatpush1.msra.mxu0 0.0
    %682 = vmatprep.subr.mxu0 0.0
    %683 = vmatpush1.msra.mxu0 0.0
    %684 = vmatprep.subr.mxu0 0.0
    %685 = vmatpush1.msra.mxu0 0.0
    %686 = vmatprep.subr.mxu0 0.0
    %687 = vmatpush1.msra.mxu0 0.0
    %688 = vmatprep.subr.mxu0 0.0
    %689 = vmatpush1.msra.mxu0 0.0
    %690 = vmatprep.subr.mxu0 0.0
    %691 = vmatpush1.msra.mxu0 0.0
    %692 = vmatprep.subr.mxu0 0.0
    %693 = vmatpush1.msra.mxu0 0.0
    %694 = vmatprep.subr.mxu0 0.0
    %695 = vmatpush1.msra.mxu0 0.0
    %696 = vmatprep.subr.mxu0 0.0
    %697 = vmatpush1.msra.mxu0 0.0
    %698 = vmatprep.subr.mxu0 0.0
    %699 = vmatpush1.msra.mxu0 0.0
    %700 = vmatprep.subr.mxu0 0.0
    %701 = vmatpush1.msra.mxu0 0.0
    %702 = vmatprep.subr.mxu0 0.0
    %703 = vmatpush1.msra.mxu0 0.0
    %704 = vmatprep.subr.mxu0 0.0
    %705 = vmatpush1.msra.mxu0 0.0
    %706 = vmatprep.subr.mxu0 0.0
    %707 = vmatpush1.msra.mxu0 0.0
    %708 = vmatprep.subr.mxu0 0.0
    %709 = vmatpush1.msra.mxu0 0.0
    %710 = vmatprep.subr.mxu0 0.0
    %711 = vmatpush1.msra.mxu0 0.0
    %712 = vmatprep.subr.mxu0 0.0
    %713 = vmatpush1.msra.mxu0 0.0
    %714 = vmatprep.subr.mxu0 0.0
    %715 = vmatpush1.msra.mxu0 0.0
    %716 = vmatprep.subr.mxu0 0.0
    %717 = vmatpush1.msra.mxu0 0.0
    %718 = vmatprep.subr.mxu0 0.0
    %719 = vmatpush1.msra.mxu0 0.0
    %720 = vmatprep.mubr.f32.mxu0 0.0
    %721 = vmatmul.mubr.f32.gmra.mrb[0].mxu0 %v651
    %v722 = vpop.f32.mrb[0].mxu0
    %v723 = vadd.f32 %v642, %v722
    %v724 = vpop.f32.mrb[0].mxu0
    %725 = vmatprep.mubr.f32.mxu0 0.0
    %726 = vmatmul.mubr.f32.gmra.mrb[0].mxu0 %v654
    %v727 = vpop.f32.mrb[0].mxu0
    %v728 = vadd.f32 %v647, %v727
    %v729 = vpop.f32.mrb[0].mxu0
    %730 = vdwg.mxu0
    %v731 = vld [vmem:[%s12] sm:$0x1]
    %v733 = vlaneseq
    %v734 = vshrl.u32 %v733, 7
    %v735 = vsub.s32 0, %v734
    %v736 = vrot.slane %v731, %v735
    %v738 = vadd.f32 %v723, %v736
    %v739 = vadd.f32 %v728, %v736
    %740 = vst.msk [vmem:[#allocation2] sm:$0xff] %vm326, %v738
    %741 = vst.msk [vmem:[#allocation2 + $0x8] sm:$0xff] %vm326, %v739
    // Predicated region
    $region54: #{tpu_custom_call.1} parent=1 // pred_check
      _
    $region55: #{tpu_custom_call.1} parent=1 // pred_check_branch
      %743 = sbr.rel (0) target = $region57
    $region56: #{tpu_custom_call.1} parent=1 // pred_region
      %s745 = ssub.s32 256, 256
      %746 = vsyncadd [#allocation3], %s745
      %s747 = sshll.u32 [#allocation2], 4
      %s748 = int_to_ptr.vmem [resolvable:$true] %s747
      %753 = dma.vmem_to_hbm [thread:$0]  %s748, 256, %s13, [#allocation3], 128, 128, 8
    $region57: #{tpu_custom_call.1} parent=1 // pred_fallthru
      _
    // Predicated region
    $region58: #{tpu_custom_call.1} parent=1 // pred_check
      _
    $region59: #{tpu_custom_call.1} parent=1 // pred_check_branch
      %755 = sbr.rel (0) target = $region61
    $region60: #{tpu_custom_call.1} parent=1 // pred_region
      %756 = dma.done [#allocation3], 256
    $region61: #{tpu_custom_call.1} parent=1 // pred_fallthru
      _
    %757 = vsyncpa [#allocation3], 1

</llo_original>
